<compile_context>
chip_gen: v6e
topology: v6e:2x2x1
jax: 0.10.0
libtpu: 0.0.40
codegen_flags: <defaults>
</compile_context>

<pallas_src>
import jax
import jax.numpy as jnp
from jax.experimental import pallas as pl
from jax.experimental.pallas import tpu as pltpu

# Small but vreg/MXU-friendly sizes.
B, E, H, V, T = 8, 128, 128, 256, 8


def rnnlm_seq_ce_kernel(tok_ref, lbl_ref, h0_ref, c0_ref, embed_ref,
                        w_ih_ref, w_hh_ref, b_gates_ref, w_out_ref, b_out_ref,
                        h_out_ref, c_out_ref, loss_ref):
    n_b, n_h = h0_ref.shape
    n_tb = tok_ref.shape[0]
    n_t = n_tb // n_b
    n_v = embed_ref.shape[0]

    # ---- Phase 1 (non-recurrent): embedding gather + input half of gates ----
    # One-hot matmul gather (exact: exactly one 1.0 per row), M = T*B rows.
    tok = tok_ref[...]                                           # (TB, 1) i32
    vocab_iota = jax.lax.broadcasted_iota(jnp.int32, (n_tb, n_v), 1)
    onehot_tok = jnp.where(vocab_iota == tok, 1.0, 0.0).astype(jnp.bfloat16)
    x_emb = jnp.dot(onehot_tok, embed_ref[...],
                    preferred_element_type=jnp.float32).astype(jnp.bfloat16)
    # x @ W_ih has no dependence on h: hoist it (plus the bias) off the
    # serial critical path as one batched (T*B, E) @ (E, 4H) matmul.
    pre_gates = jnp.dot(x_emb, w_ih_ref[...],
                        preferred_element_type=jnp.float32) + b_gates_ref[...]

    # ---- Phase 2: the serial LSTM recurrence (fully unrolled, static T) ----
    # Only h_bf16 @ W_hh and the elementwise gate math remain on the chain.
    w_hh = w_hh_ref[...]
    h = h0_ref[...]                                              # (B, H) f32
    c = c0_ref[...]                                              # (B, H) f32
    hs = []
    for t in range(n_t):
        gates = pre_gates[t * n_b:(t + 1) * n_b, :] + jnp.dot(
            h.astype(jnp.bfloat16), w_hh, preferred_element_type=jnp.float32)
        # PyTorch LSTM gate order: i, f, g, o — elementwise math in f32.
        i_g = jax.nn.sigmoid(gates[:, 0 * n_h:1 * n_h])
        f_g = jax.nn.sigmoid(gates[:, 1 * n_h:2 * n_h])
        g_g = jnp.tanh(gates[:, 2 * n_h:3 * n_h])
        o_g = jax.nn.sigmoid(gates[:, 3 * n_h:4 * n_h])
        c = f_g * c + i_g * g_g
        h = o_g * jnp.tanh(c)
        hs.append(h.astype(jnp.bfloat16))
    h_out_ref[...] = h
    c_out_ref[...] = c

    # ---- Phase 3 (batched post-pass): vocab projection + cross-entropy ----
    hs_all = jnp.concatenate(hs, axis=0)                         # (TB, H) bf16
    logits = jnp.dot(hs_all, w_out_ref[...],
                     preferred_element_type=jnp.float32) + b_out_ref[...]
    # CrossEntropyLoss(reduction='none'): loss = logsumexp(logits) - logits[label]
    m = jnp.max(logits, axis=-1, keepdims=True)
    lse = m + jnp.log(jnp.sum(jnp.exp(logits - m), axis=-1, keepdims=True))
    # NOTE: labels assumed in [0, V); an out-of-range label silently yields
    # loss = logsumexp (all-false target mask).
    lbl = lbl_ref[...]                                           # (TB, 1) i32
    tgt_mask = vocab_iota == lbl
    tgt = jnp.sum(jnp.where(tgt_mask, logits, 0.0), axis=-1, keepdims=True)
    loss_ref[...] = lse - tgt                                    # (TB, 1) f32


def init_params(key):
    ks = jax.random.split(key, 7)
    s = 0.1
    # MXU-facing weights stored in bf16 (halves HBM->VMEM traffic); biases f32.
    return {
        "embed": (jax.random.normal(ks[0], (V, E), jnp.float32) * s).astype(jnp.bfloat16),
        "w_ih": (jax.random.normal(ks[1], (E, 4 * H), jnp.float32) * s).astype(jnp.bfloat16),
        "w_hh": (jax.random.normal(ks[2], (H, 4 * H), jnp.float32) * s).astype(jnp.bfloat16),
        "b_ih": jax.random.normal(ks[3], (1, 4 * H), jnp.float32) * s,
        "b_hh": jax.random.normal(ks[4], (1, 4 * H), jnp.float32) * s,
        "w_out": (jax.random.normal(ks[5], (H, V), jnp.float32) * s).astype(jnp.bfloat16),
        "b_out": jax.random.normal(ks[6], (1, V), jnp.float32) * s,
    }


@jax.jit
def classifier_forward(params, state, x_tokens, t_labels):
    """Sequence version of ClassifierWithState.forward with label_key=-1.

    x_tokens, t_labels: (T, B) int32.  Applies the wrapped RNNLM predictor
    (embed -> LSTM cell -> vocab projection) + CrossEntropyLoss(reduction='none')
    at every timestep, carrying the LSTM state through one pallas_call.

    Returns ((h_T, c_T), loss) where loss has shape (T, B) — loss[t] is exactly
    the (B,) per-example loss the PyTorch wrapper returns for timestep t.
    """
    h0, c0 = state
    n_t, n_b = x_tokens.shape
    n_h = h0.shape[-1]

    # Wrapper keeps only zero-cost layout plumbing: flatten (T, B) -> (T*B, 1)
    # so every in-kernel mask/select is a plain lane iota compare (no in-kernel
    # relayout), and fuse the two gate biases.
    tokens_flat = x_tokens.astype(jnp.int32).reshape(n_t * n_b, 1)
    labels_flat = t_labels.astype(jnp.int32).reshape(n_t * n_b, 1)
    b_gates = (params["b_ih"] + params["b_hh"]).astype(jnp.float32)   # (1, 4H)

    def vmem_spec():
        # Full array, resident in VMEM for the single kernel invocation.
        return pl.BlockSpec(memory_space=pltpu.MemorySpace.VMEM)

    h_out, c_out, loss_flat = pl.pallas_call(
        rnnlm_seq_ce_kernel,
        in_specs=[vmem_spec() for _ in range(10)],
        out_specs=[vmem_spec() for _ in range(3)],
        out_shape=[
            jax.ShapeDtypeStruct((n_b, n_h), jnp.float32),
            jax.ShapeDtypeStruct((n_b, n_h), jnp.float32),
            jax.ShapeDtypeStruct((n_t * n_b, 1), jnp.float32),
        ],
    )(tokens_flat, labels_flat, h0, c0, params["embed"], params["w_ih"],
      params["w_hh"], b_gates, params["w_out"], params["b_out"])

    return (h_out, c_out), loss_flat.reshape(n_t, n_b)          # loss: (T, B)


def reference_forward(params, state, x_tokens, t_labels):
    """Pure-JAX reference mirroring the kernel's bf16 weight/activation feed."""
    h, c = state
    n_t, n_b = x_tokens.shape
    n_h = h.shape[-1]
    w_ih = params["w_ih"].astype(jnp.float32)
    w_hh = params["w_hh"].astype(jnp.float32)
    w_out = params["w_out"].astype(jnp.float32)
    b_g = params["b_ih"] + params["b_hh"]
    losses = []
    for t in range(n_t):
        x = params["embed"][x_tokens[t]].astype(jnp.float32)
        h_mx = h.astype(jnp.bfloat16).astype(jnp.float32)   # mimic in-kernel bf16 feed
        gates = (x @ w_ih + b_g) + h_mx @ w_hh
        i_g = jax.nn.sigmoid(gates[:, 0 * n_h:1 * n_h])
        f_g = jax.nn.sigmoid(gates[:, 1 * n_h:2 * n_h])
        g_g = jnp.tanh(gates[:, 2 * n_h:3 * n_h])
        o_g = jax.nn.sigmoid(gates[:, 3 * n_h:4 * n_h])
        c = f_g * c + i_g * g_g
        h = o_g * jnp.tanh(c)
        logits = h.astype(jnp.bfloat16).astype(jnp.float32) @ w_out + params["b_out"]
        logp = jax.nn.log_softmax(logits, axis=-1)
        losses.append(-logp[jnp.arange(n_b), t_labels[t]])
    return (h, c), jnp.stack(losses)                        # loss: (T, B)


if __name__ == "__main__":
    key = jax.random.PRNGKey(0)
    pkey, xkey, tkey = jax.random.split(key, 3)

    params = init_params(pkey)
    x_tokens = jax.random.randint(xkey, (T, B), 0, V, dtype=jnp.int32)   # features
    t_labels = jax.random.randint(tkey, (T, B), 0, V, dtype=jnp.int32)   # labels (label_key=-1)
    state = (jnp.zeros((B, H), jnp.float32), jnp.zeros((B, H), jnp.float32))

    (h_new, c_new), loss = classifier_forward(params, state, x_tokens, t_labels)
    jax.block_until_ready((h_new, c_new, loss))

    # Sanity check against the pure-JAX reference.
    (h_ref, c_ref), loss_ref = reference_forward(params, state, x_tokens, t_labels)
    assert loss.shape == (T, B)                      # per-step CrossEntropy(reduction='none')
    assert jnp.allclose(h_new, h_ref, atol=1e-3, rtol=1e-3)
    assert jnp.allclose(c_new, c_ref, atol=1e-3, rtol=1e-3)
    assert jnp.allclose(loss, loss_ref, atol=1e-3, rtol=1e-3)

    print("KERNEL_OK")
</pallas_src>

<mosaic_0001>
module attributes {stable_mosaic.version = 11 : i64} {
  func.func @rnnlm_seq_ce_kernel(%arg0: memref<64x1xi32, #tpu.memory_space<vmem>>, %arg1: memref<64x1xi32, #tpu.memory_space<vmem>>, %arg2: memref<8x128xf32, #tpu.memory_space<vmem>>, %arg3: memref<8x128xf32, #tpu.memory_space<vmem>>, %arg4: memref<256x128xbf16, #tpu.memory_space<vmem>>, %arg5: memref<128x512xbf16, #tpu.memory_space<vmem>>, %arg6: memref<128x512xbf16, #tpu.memory_space<vmem>>, %arg7: memref<1x512xf32, #tpu.memory_space<vmem>>, %arg8: memref<128x256xbf16, #tpu.memory_space<vmem>>, %arg9: memref<1x256xf32, #tpu.memory_space<vmem>>, %arg10: memref<8x128xf32, #tpu.memory_space<vmem>>, %arg11: memref<8x128xf32, #tpu.memory_space<vmem>>, %arg12: memref<64x1xf32, #tpu.memory_space<vmem>>) attributes {dimension_semantics = [], scalar_prefetch = 0 : i64, scratch_operands = 0 : i64, tpu.core_type = #tpu.core_type<tc>} {
    %c0 = arith.constant 0 : index
    %c0_0 = arith.constant 0 : index
    %0 = vector.load %arg0[%c0, %c0_0] : memref<64x1xi32, #tpu.memory_space<vmem>>, vector<64x1xi32>
    %1 = tpu.iota {dimensions = array<i32: 1>} : vector<64x256xi32>
    %2 = vector.broadcast %0 : vector<64x1xi32> to vector<64x256xi32>
    %3 = arith.cmpi eq, %1, %2 : vector<64x256xi32>
    %cst = arith.constant 1.000000e+00 : f32
    %cst_1 = arith.constant 0.000000e+00 : f32
    %4 = vector.broadcast %cst : f32 to vector<64x256xf32>
    %5 = vector.broadcast %cst_1 : f32 to vector<64x256xf32>
    %6 = arith.select %3, %4, %5 : vector<64x256xi1>, vector<64x256xf32>
    %7 = arith.truncf %6 : vector<64x256xf32> to vector<64x256xbf16>
    %c0_2 = arith.constant 0 : index
    %c0_3 = arith.constant 0 : index
    %8 = vector.load %arg4[%c0_2, %c0_3] : memref<256x128xbf16, #tpu.memory_space<vmem>>, vector<256x128xbf16>
    %cst_4 = arith.constant dense<0.000000e+00> : vector<64x128xf32>
    %9 = tpu.matmul %7, %8, %cst_4 {dimension_numbers = #tpu.dot_dimension_numbers<[1], [0], [0], [1], [0, 0, 1, 1], [], []>} : vector<64x256xbf16>, vector<256x128xbf16>, vector<64x128xf32> -> vector<64x128xf32>
    %10 = arith.truncf %9 : vector<64x128xf32> to vector<64x128xbf16>
    %c0_5 = arith.constant 0 : index
    %c0_6 = arith.constant 0 : index
    %11 = vector.load %arg5[%c0_5, %c0_6] : memref<128x512xbf16, #tpu.memory_space<vmem>>, vector<128x512xbf16>
    %cst_7 = arith.constant dense<0.000000e+00> : vector<64x512xf32>
    %12 = tpu.matmul %10, %11, %cst_7 {dimension_numbers = #tpu.dot_dimension_numbers<[1], [0], [0], [1], [0, 0, 1, 1], [], []>} : vector<64x128xbf16>, vector<128x512xbf16>, vector<64x512xf32> -> vector<64x512xf32>
    %c0_8 = arith.constant 0 : index
    %c0_9 = arith.constant 0 : index
    %13 = vector.load %arg7[%c0_8, %c0_9] : memref<1x512xf32, #tpu.memory_space<vmem>>, vector<1x512xf32>
    %14 = vector.broadcast %13 : vector<1x512xf32> to vector<64x512xf32>
    %15 = arith.addf %12, %14 : vector<64x512xf32>
    %c0_10 = arith.constant 0 : index
    %c0_11 = arith.constant 0 : index
    %16 = vector.load %arg6[%c0_10, %c0_11] : memref<128x512xbf16, #tpu.memory_space<vmem>>, vector<128x512xbf16>
    %c0_12 = arith.constant 0 : index
    %c0_13 = arith.constant 0 : index
    %17 = vector.load %arg2[%c0_12, %c0_13] : memref<8x128xf32, #tpu.memory_space<vmem>>, vector<8x128xf32>
    %c0_14 = arith.constant 0 : index
    %c0_15 = arith.constant 0 : index
    %18 = vector.load %arg3[%c0_14, %c0_15] : memref<8x128xf32, #tpu.memory_space<vmem>>, vector<8x128xf32>
    %19 = vector.extract_strided_slice %15 {offsets = [0, 0], sizes = [8, 512], strides = [1, 1]} : vector<64x512xf32> to vector<8x512xf32>
    %20 = arith.truncf %17 : vector<8x128xf32> to vector<8x128xbf16>
    %cst_16 = arith.constant dense<0.000000e+00> : vector<8x512xf32>
    %21 = tpu.matmul %20, %16, %cst_16 {dimension_numbers = #tpu.dot_dimension_numbers<[1], [0], [0], [1], [0, 0, 1, 1], [], []>} : vector<8x128xbf16>, vector<128x512xbf16>, vector<8x512xf32> -> vector<8x512xf32>
    %22 = arith.addf %19, %21 : vector<8x512xf32>
    %23 = vector.extract_strided_slice %22 {offsets = [0, 0], sizes = [8, 128], strides = [1, 1]} : vector<8x512xf32> to vector<8x128xf32>
    %24 = arith.negf %23 : vector<8x128xf32>
    %25 = math.exp %24 : vector<8x128xf32>
    %cst_17 = arith.constant 1.000000e+00 : f32
    %26 = vector.broadcast %cst_17 : f32 to vector<8x128xf32>
    %27 = arith.addf %26, %25 : vector<8x128xf32>
    %28 = arith.divf %26, %27 : vector<8x128xf32>
    %29 = vector.extract_strided_slice %22 {offsets = [0, 128], sizes = [8, 128], strides = [1, 1]} : vector<8x512xf32> to vector<8x128xf32>
    %30 = arith.negf %29 : vector<8x128xf32>
    %31 = math.exp %30 : vector<8x128xf32>
    %cst_18 = arith.constant 1.000000e+00 : f32
    %32 = vector.broadcast %cst_18 : f32 to vector<8x128xf32>
    %33 = arith.addf %32, %31 : vector<8x128xf32>
    %34 = arith.divf %32, %33 : vector<8x128xf32>
    %35 = vector.extract_strided_slice %22 {offsets = [0, 256], sizes = [8, 128], strides = [1, 1]} : vector<8x512xf32> to vector<8x128xf32>
    %36 = math.tanh %35 : vector<8x128xf32>
    %37 = vector.extract_strided_slice %22 {offsets = [0, 384], sizes = [8, 128], strides = [1, 1]} : vector<8x512xf32> to vector<8x128xf32>
    %38 = arith.negf %37 : vector<8x128xf32>
    %39 = math.exp %38 : vector<8x128xf32>
    %cst_19 = arith.constant 1.000000e+00 : f32
    %40 = vector.broadcast %cst_19 : f32 to vector<8x128xf32>
    %41 = arith.addf %40, %39 : vector<8x128xf32>
    %42 = arith.divf %40, %41 : vector<8x128xf32>
    %43 = arith.mulf %34, %18 : vector<8x128xf32>
    %44 = arith.mulf %28, %36 : vector<8x128xf32>
    %45 = arith.addf %43, %44 : vector<8x128xf32>
    %46 = math.tanh %45 : vector<8x128xf32>
    %47 = arith.mulf %42, %46 : vector<8x128xf32>
    %48 = arith.truncf %47 : vector<8x128xf32> to vector<8x128xbf16>
    %49 = vector.extract_strided_slice %15 {offsets = [8, 0], sizes = [8, 512], strides = [1, 1]} : vector<64x512xf32> to vector<8x512xf32>
    %50 = arith.truncf %47 : vector<8x128xf32> to vector<8x128xbf16>
    %cst_20 = arith.constant dense<0.000000e+00> : vector<8x512xf32>
    %51 = tpu.matmul %50, %16, %cst_20 {dimension_numbers = #tpu.dot_dimension_numbers<[1], [0], [0], [1], [0, 0, 1, 1], [], []>} : vector<8x128xbf16>, vector<128x512xbf16>, vector<8x512xf32> -> vector<8x512xf32>
    %52 = arith.addf %49, %51 : vector<8x512xf32>
    %53 = vector.extract_strided_slice %52 {offsets = [0, 0], sizes = [8, 128], strides = [1, 1]} : vector<8x512xf32> to vector<8x128xf32>
    %54 = arith.negf %53 : vector<8x128xf32>
    %55 = math.exp %54 : vector<8x128xf32>
    %cst_21 = arith.constant 1.000000e+00 : f32
    %56 = vector.broadcast %cst_21 : f32 to vector<8x128xf32>
    %57 = arith.addf %56, %55 : vector<8x128xf32>
    %58 = arith.divf %56, %57 : vector<8x128xf32>
    %59 = vector.extract_strided_slice %52 {offsets = [0, 128], sizes = [8, 128], strides = [1, 1]} : vector<8x512xf32> to vector<8x128xf32>
    %60 = arith.negf %59 : vector<8x128xf32>
    %61 = math.exp %60 : vector<8x128xf32>
    %cst_22 = arith.constant 1.000000e+00 : f32
    %62 = vector.broadcast %cst_22 : f32 to vector<8x128xf32>
    %63 = arith.addf %62, %61 : vector<8x128xf32>
    %64 = arith.divf %62, %63 : vector<8x128xf32>
    %65 = vector.extract_strided_slice %52 {offsets = [0, 256], sizes = [8, 128], strides = [1, 1]} : vector<8x512xf32> to vector<8x128xf32>
    %66 = math.tanh %65 : vector<8x128xf32>
    %67 = vector.extract_strided_slice %52 {offsets = [0, 384], sizes = [8, 128], strides = [1, 1]} : vector<8x512xf32> to vector<8x128xf32>
    %68 = arith.negf %67 : vector<8x128xf32>
    %69 = math.exp %68 : vector<8x128xf32>
    %cst_23 = arith.constant 1.000000e+00 : f32
    %70 = vector.broadcast %cst_23 : f32 to vector<8x128xf32>
    %71 = arith.addf %70, %69 : vector<8x128xf32>
    %72 = arith.divf %70, %71 : vector<8x128xf32>
    %73 = arith.mulf %64, %45 : vector<8x128xf32>
    %74 = arith.mulf %58, %66 : vector<8x128xf32>
    %75 = arith.addf %73, %74 : vector<8x128xf32>
    %76 = math.tanh %75 : vector<8x128xf32>
    %77 = arith.mulf %72, %76 : vector<8x128xf32>
    %78 = arith.truncf %77 : vector<8x128xf32> to vector<8x128xbf16>
    %79 = vector.extract_strided_slice %15 {offsets = [16, 0], sizes = [8, 512], strides = [1, 1]} : vector<64x512xf32> to vector<8x512xf32>
    %80 = arith.truncf %77 : vector<8x128xf32> to vector<8x128xbf16>
    %cst_24 = arith.constant dense<0.000000e+00> : vector<8x512xf32>
    %81 = tpu.matmul %80, %16, %cst_24 {dimension_numbers = #tpu.dot_dimension_numbers<[1], [0], [0], [1], [0, 0, 1, 1], [], []>} : vector<8x128xbf16>, vector<128x512xbf16>, vector<8x512xf32> -> vector<8x512xf32>
    %82 = arith.addf %79, %81 : vector<8x512xf32>
    %83 = vector.extract_strided_slice %82 {offsets = [0, 0], sizes = [8, 128], strides = [1, 1]} : vector<8x512xf32> to vector<8x128xf32>
    %84 = arith.negf %83 : vector<8x128xf32>
    %85 = math.exp %84 : vector<8x128xf32>
    %cst_25 = arith.constant 1.000000e+00 : f32
    %86 = vector.broadcast %cst_25 : f32 to vector<8x128xf32>
    %87 = arith.addf %86, %85 : vector<8x128xf32>
    %88 = arith.divf %86, %87 : vector<8x128xf32>
    %89 = vector.extract_strided_slice %82 {offsets = [0, 128], sizes = [8, 128], strides = [1, 1]} : vector<8x512xf32> to vector<8x128xf32>
    %90 = arith.negf %89 : vector<8x128xf32>
    %91 = math.exp %90 : vector<8x128xf32>
    %cst_26 = arith.constant 1.000000e+00 : f32
    %92 = vector.broadcast %cst_26 : f32 to vector<8x128xf32>
    %93 = arith.addf %92, %91 : vector<8x128xf32>
    %94 = arith.divf %92, %93 : vector<8x128xf32>
    %95 = vector.extract_strided_slice %82 {offsets = [0, 256], sizes = [8, 128], strides = [1, 1]} : vector<8x512xf32> to vector<8x128xf32>
    %96 = math.tanh %95 : vector<8x128xf32>
    %97 = vector.extract_strided_slice %82 {offsets = [0, 384], sizes = [8, 128], strides = [1, 1]} : vector<8x512xf32> to vector<8x128xf32>
    %98 = arith.negf %97 : vector<8x128xf32>
    %99 = math.exp %98 : vector<8x128xf32>
    %cst_27 = arith.constant 1.000000e+00 : f32
    %100 = vector.broadcast %cst_27 : f32 to vector<8x128xf32>
    %101 = arith.addf %100, %99 : vector<8x128xf32>
    %102 = arith.divf %100, %101 : vector<8x128xf32>
    %103 = arith.mulf %94, %75 : vector<8x128xf32>
    %104 = arith.mulf %88, %96 : vector<8x128xf32>
    %105 = arith.addf %103, %104 : vector<8x128xf32>
    %106 = math.tanh %105 : vector<8x128xf32>
    %107 = arith.mulf %102, %106 : vector<8x128xf32>
    %108 = arith.truncf %107 : vector<8x128xf32> to vector<8x128xbf16>
    %109 = vector.extract_strided_slice %15 {offsets = [24, 0], sizes = [8, 512], strides = [1, 1]} : vector<64x512xf32> to vector<8x512xf32>
    %110 = arith.truncf %107 : vector<8x128xf32> to vector<8x128xbf16>
    %cst_28 = arith.constant dense<0.000000e+00> : vector<8x512xf32>
    %111 = tpu.matmul %110, %16, %cst_28 {dimension_numbers = #tpu.dot_dimension_numbers<[1], [0], [0], [1], [0, 0, 1, 1], [], []>} : vector<8x128xbf16>, vector<128x512xbf16>, vector<8x512xf32> -> vector<8x512xf32>
    %112 = arith.addf %109, %111 : vector<8x512xf32>
    %113 = vector.extract_strided_slice %112 {offsets = [0, 0], sizes = [8, 128], strides = [1, 1]} : vector<8x512xf32> to vector<8x128xf32>
    %114 = arith.negf %113 : vector<8x128xf32>
    %115 = math.exp %114 : vector<8x128xf32>
    %cst_29 = arith.constant 1.000000e+00 : f32
    %116 = vector.broadcast %cst_29 : f32 to vector<8x128xf32>
    %117 = arith.addf %116, %115 : vector<8x128xf32>
    %118 = arith.divf %116, %117 : vector<8x128xf32>
    %119 = vector.extract_strided_slice %112 {offsets = [0, 128], sizes = [8, 128], strides = [1, 1]} : vector<8x512xf32> to vector<8x128xf32>
    %120 = arith.negf %119 : vector<8x128xf32>
    %121 = math.exp %120 : vector<8x128xf32>
    %cst_30 = arith.constant 1.000000e+00 : f32
    %122 = vector.broadcast %cst_30 : f32 to vector<8x128xf32>
    %123 = arith.addf %122, %121 : vector<8x128xf32>
    %124 = arith.divf %122, %123 : vector<8x128xf32>
    %125 = vector.extract_strided_slice %112 {offsets = [0, 256], sizes = [8, 128], strides = [1, 1]} : vector<8x512xf32> to vector<8x128xf32>
    %126 = math.tanh %125 : vector<8x128xf32>
    %127 = vector.extract_strided_slice %112 {offsets = [0, 384], sizes = [8, 128], strides = [1, 1]} : vector<8x512xf32> to vector<8x128xf32>
    %128 = arith.negf %127 : vector<8x128xf32>
    %129 = math.exp %128 : vector<8x128xf32>
    %cst_31 = arith.constant 1.000000e+00 : f32
    %130 = vector.broadcast %cst_31 : f32 to vector<8x128xf32>
    %131 = arith.addf %130, %129 : vector<8x128xf32>
    %132 = arith.divf %130, %131 : vector<8x128xf32>
    %133 = arith.mulf %124, %105 : vector<8x128xf32>
    %134 = arith.mulf %118, %126 : vector<8x128xf32>
    %135 = arith.addf %133, %134 : vector<8x128xf32>
    %136 = math.tanh %135 : vector<8x128xf32>
    %137 = arith.mulf %132, %136 : vector<8x128xf32>
    %138 = arith.truncf %137 : vector<8x128xf32> to vector<8x128xbf16>
    %139 = vector.extract_strided_slice %15 {offsets = [32, 0], sizes = [8, 512], strides = [1, 1]} : vector<64x512xf32> to vector<8x512xf32>
    %140 = arith.truncf %137 : vector<8x128xf32> to vector<8x128xbf16>
    %cst_32 = arith.constant dense<0.000000e+00> : vector<8x512xf32>
    %141 = tpu.matmul %140, %16, %cst_32 {dimension_numbers = #tpu.dot_dimension_numbers<[1], [0], [0], [1], [0, 0, 1, 1], [], []>} : vector<8x128xbf16>, vector<128x512xbf16>, vector<8x512xf32> -> vector<8x512xf32>
    %142 = arith.addf %139, %141 : vector<8x512xf32>
    %143 = vector.extract_strided_slice %142 {offsets = [0, 0], sizes = [8, 128], strides = [1, 1]} : vector<8x512xf32> to vector<8x128xf32>
    %144 = arith.negf %143 : vector<8x128xf32>
    %145 = math.exp %144 : vector<8x128xf32>
    %cst_33 = arith.constant 1.000000e+00 : f32
    %146 = vector.broadcast %cst_33 : f32 to vector<8x128xf32>
    %147 = arith.addf %146, %145 : vector<8x128xf32>
    %148 = arith.divf %146, %147 : vector<8x128xf32>
    %149 = vector.extract_strided_slice %142 {offsets = [0, 128], sizes = [8, 128], strides = [1, 1]} : vector<8x512xf32> to vector<8x128xf32>
    %150 = arith.negf %149 : vector<8x128xf32>
    %151 = math.exp %150 : vector<8x128xf32>
    %cst_34 = arith.constant 1.000000e+00 : f32
    %152 = vector.broadcast %cst_34 : f32 to vector<8x128xf32>
    %153 = arith.addf %152, %151 : vector<8x128xf32>
    %154 = arith.divf %152, %153 : vector<8x128xf32>
    %155 = vector.extract_strided_slice %142 {offsets = [0, 256], sizes = [8, 128], strides = [1, 1]} : vector<8x512xf32> to vector<8x128xf32>
    %156 = math.tanh %155 : vector<8x128xf32>
    %157 = vector.extract_strided_slice %142 {offsets = [0, 384], sizes = [8, 128], strides = [1, 1]} : vector<8x512xf32> to vector<8x128xf32>
    %158 = arith.negf %157 : vector<8x128xf32>
    %159 = math.exp %158 : vector<8x128xf32>
    %cst_35 = arith.constant 1.000000e+00 : f32
    %160 = vector.broadcast %cst_35 : f32 to vector<8x128xf32>
    %161 = arith.addf %160, %159 : vector<8x128xf32>
    %162 = arith.divf %160, %161 : vector<8x128xf32>
    %163 = arith.mulf %154, %135 : vector<8x128xf32>
    %164 = arith.mulf %148, %156 : vector<8x128xf32>
    %165 = arith.addf %163, %164 : vector<8x128xf32>
    %166 = math.tanh %165 : vector<8x128xf32>
    %167 = arith.mulf %162, %166 : vector<8x128xf32>
    %168 = arith.truncf %167 : vector<8x128xf32> to vector<8x128xbf16>
    %169 = vector.extract_strided_slice %15 {offsets = [40, 0], sizes = [8, 512], strides = [1, 1]} : vector<64x512xf32> to vector<8x512xf32>
    %170 = arith.truncf %167 : vector<8x128xf32> to vector<8x128xbf16>
    %cst_36 = arith.constant dense<0.000000e+00> : vector<8x512xf32>
    %171 = tpu.matmul %170, %16, %cst_36 {dimension_numbers = #tpu.dot_dimension_numbers<[1], [0], [0], [1], [0, 0, 1, 1], [], []>} : vector<8x128xbf16>, vector<128x512xbf16>, vector<8x512xf32> -> vector<8x512xf32>
    %172 = arith.addf %169, %171 : vector<8x512xf32>
    %173 = vector.extract_strided_slice %172 {offsets = [0, 0], sizes = [8, 128], strides = [1, 1]} : vector<8x512xf32> to vector<8x128xf32>
    %174 = arith.negf %173 : vector<8x128xf32>
    %175 = math.exp %174 : vector<8x128xf32>
    %cst_37 = arith.constant 1.000000e+00 : f32
    %176 = vector.broadcast %cst_37 : f32 to vector<8x128xf32>
    %177 = arith.addf %176, %175 : vector<8x128xf32>
    %178 = arith.divf %176, %177 : vector<8x128xf32>
    %179 = vector.extract_strided_slice %172 {offsets = [0, 128], sizes = [8, 128], strides = [1, 1]} : vector<8x512xf32> to vector<8x128xf32>
    %180 = arith.negf %179 : vector<8x128xf32>
    %181 = math.exp %180 : vector<8x128xf32>
    %cst_38 = arith.constant 1.000000e+00 : f32
    %182 = vector.broadcast %cst_38 : f32 to vector<8x128xf32>
    %183 = arith.addf %182, %181 : vector<8x128xf32>
    %184 = arith.divf %182, %183 : vector<8x128xf32>
    %185 = vector.extract_strided_slice %172 {offsets = [0, 256], sizes = [8, 128], strides = [1, 1]} : vector<8x512xf32> to vector<8x128xf32>
    %186 = math.tanh %185 : vector<8x128xf32>
    %187 = vector.extract_strided_slice %172 {offsets = [0, 384], sizes = [8, 128], strides = [1, 1]} : vector<8x512xf32> to vector<8x128xf32>
    %188 = arith.negf %187 : vector<8x128xf32>
    %189 = math.exp %188 : vector<8x128xf32>
    %cst_39 = arith.constant 1.000000e+00 : f32
    %190 = vector.broadcast %cst_39 : f32 to vector<8x128xf32>
    %191 = arith.addf %190, %189 : vector<8x128xf32>
    %192 = arith.divf %190, %191 : vector<8x128xf32>
    %193 = arith.mulf %184, %165 : vector<8x128xf32>
    %194 = arith.mulf %178, %186 : vector<8x128xf32>
    %195 = arith.addf %193, %194 : vector<8x128xf32>
    %196 = math.tanh %195 : vector<8x128xf32>
    %197 = arith.mulf %192, %196 : vector<8x128xf32>
    %198 = arith.truncf %197 : vector<8x128xf32> to vector<8x128xbf16>
    %199 = vector.extract_strided_slice %15 {offsets = [48, 0], sizes = [8, 512], strides = [1, 1]} : vector<64x512xf32> to vector<8x512xf32>
    %200 = arith.truncf %197 : vector<8x128xf32> to vector<8x128xbf16>
    %cst_40 = arith.constant dense<0.000000e+00> : vector<8x512xf32>
    %201 = tpu.matmul %200, %16, %cst_40 {dimension_numbers = #tpu.dot_dimension_numbers<[1], [0], [0], [1], [0, 0, 1, 1], [], []>} : vector<8x128xbf16>, vector<128x512xbf16>, vector<8x512xf32> -> vector<8x512xf32>
    %202 = arith.addf %199, %201 : vector<8x512xf32>
    %203 = vector.extract_strided_slice %202 {offsets = [0, 0], sizes = [8, 128], strides = [1, 1]} : vector<8x512xf32> to vector<8x128xf32>
    %204 = arith.negf %203 : vector<8x128xf32>
    %205 = math.exp %204 : vector<8x128xf32>
    %cst_41 = arith.constant 1.000000e+00 : f32
    %206 = vector.broadcast %cst_41 : f32 to vector<8x128xf32>
    %207 = arith.addf %206, %205 : vector<8x128xf32>
    %208 = arith.divf %206, %207 : vector<8x128xf32>
    %209 = vector.extract_strided_slice %202 {offsets = [0, 128], sizes = [8, 128], strides = [1, 1]} : vector<8x512xf32> to vector<8x128xf32>
    %210 = arith.negf %209 : vector<8x128xf32>
    %211 = math.exp %210 : vector<8x128xf32>
    %cst_42 = arith.constant 1.000000e+00 : f32
    %212 = vector.broadcast %cst_42 : f32 to vector<8x128xf32>
    %213 = arith.addf %212, %211 : vector<8x128xf32>
    %214 = arith.divf %212, %213 : vector<8x128xf32>
    %215 = vector.extract_strided_slice %202 {offsets = [0, 256], sizes = [8, 128], strides = [1, 1]} : vector<8x512xf32> to vector<8x128xf32>
    %216 = math.tanh %215 : vector<8x128xf32>
    %217 = vector.extract_strided_slice %202 {offsets = [0, 384], sizes = [8, 128], strides = [1, 1]} : vector<8x512xf32> to vector<8x128xf32>
    %218 = arith.negf %217 : vector<8x128xf32>
    %219 = math.exp %218 : vector<8x128xf32>
    %cst_43 = arith.constant 1.000000e+00 : f32
    %220 = vector.broadcast %cst_43 : f32 to vector<8x128xf32>
    %221 = arith.addf %220, %219 : vector<8x128xf32>
    %222 = arith.divf %220, %221 : vector<8x128xf32>
    %223 = arith.mulf %214, %195 : vector<8x128xf32>
    %224 = arith.mulf %208, %216 : vector<8x128xf32>
    %225 = arith.addf %223, %224 : vector<8x128xf32>
    %226 = math.tanh %225 : vector<8x128xf32>
    %227 = arith.mulf %222, %226 : vector<8x128xf32>
    %228 = arith.truncf %227 : vector<8x128xf32> to vector<8x128xbf16>
    %229 = vector.extract_strided_slice %15 {offsets = [56, 0], sizes = [8, 512], strides = [1, 1]} : vector<64x512xf32> to vector<8x512xf32>
    %230 = arith.truncf %227 : vector<8x128xf32> to vector<8x128xbf16>
    %cst_44 = arith.constant dense<0.000000e+00> : vector<8x512xf32>
    %231 = tpu.matmul %230, %16, %cst_44 {dimension_numbers = #tpu.dot_dimension_numbers<[1], [0], [0], [1], [0, 0, 1, 1], [], []>} : vector<8x128xbf16>, vector<128x512xbf16>, vector<8x512xf32> -> vector<8x512xf32>
    %232 = arith.addf %229, %231 : vector<8x512xf32>
    %233 = vector.extract_strided_slice %232 {offsets = [0, 0], sizes = [8, 128], strides = [1, 1]} : vector<8x512xf32> to vector<8x128xf32>
    %234 = arith.negf %233 : vector<8x128xf32>
    %235 = math.exp %234 : vector<8x128xf32>
    %cst_45 = arith.constant 1.000000e+00 : f32
    %236 = vector.broadcast %cst_45 : f32 to vector<8x128xf32>
    %237 = arith.addf %236, %235 : vector<8x128xf32>
    %238 = arith.divf %236, %237 : vector<8x128xf32>
    %239 = vector.extract_strided_slice %232 {offsets = [0, 128], sizes = [8, 128], strides = [1, 1]} : vector<8x512xf32> to vector<8x128xf32>
    %240 = arith.negf %239 : vector<8x128xf32>
    %241 = math.exp %240 : vector<8x128xf32>
    %cst_46 = arith.constant 1.000000e+00 : f32
    %242 = vector.broadcast %cst_46 : f32 to vector<8x128xf32>
    %243 = arith.addf %242, %241 : vector<8x128xf32>
    %244 = arith.divf %242, %243 : vector<8x128xf32>
    %245 = vector.extract_strided_slice %232 {offsets = [0, 256], sizes = [8, 128], strides = [1, 1]} : vector<8x512xf32> to vector<8x128xf32>
    %246 = math.tanh %245 : vector<8x128xf32>
    %247 = vector.extract_strided_slice %232 {offsets = [0, 384], sizes = [8, 128], strides = [1, 1]} : vector<8x512xf32> to vector<8x128xf32>
    %248 = arith.negf %247 : vector<8x128xf32>
    %249 = math.exp %248 : vector<8x128xf32>
    %cst_47 = arith.constant 1.000000e+00 : f32
    %250 = vector.broadcast %cst_47 : f32 to vector<8x128xf32>
    %251 = arith.addf %250, %249 : vector<8x128xf32>
    %252 = arith.divf %250, %251 : vector<8x128xf32>
    %253 = arith.mulf %244, %225 : vector<8x128xf32>
    %254 = arith.mulf %238, %246 : vector<8x128xf32>
    %255 = arith.addf %253, %254 : vector<8x128xf32>
    %256 = math.tanh %255 : vector<8x128xf32>
    %257 = arith.mulf %252, %256 : vector<8x128xf32>
    %258 = arith.truncf %257 : vector<8x128xf32> to vector<8x128xbf16>
    %c0_48 = arith.constant 0 : index
    %c0_49 = arith.constant 0 : index
    %259 = vector.load %arg10[%c0_48, %c0_49] : memref<8x128xf32, #tpu.memory_space<vmem>>, vector<8x128xf32>
    tpu.vector_store %arg10[%c0_48, %c0_49], %257 {strides = array<i32>} : memref<8x128xf32, #tpu.memory_space<vmem>>, vector<8x128xf32>,
    %c0_50 = arith.constant 0 : index
    %c0_51 = arith.constant 0 : index
    %260 = vector.load %arg11[%c0_50, %c0_51] : memref<8x128xf32, #tpu.memory_space<vmem>>, vector<8x128xf32>
    tpu.vector_store %arg11[%c0_50, %c0_51], %255 {strides = array<i32>} : memref<8x128xf32, #tpu.memory_space<vmem>>, vector<8x128xf32>,
    %261 = tpu.concatenate %48, %78, %108, %138, %168, %198, %228, %258 in 0 : vector<8x128xbf16>, vector<8x128xbf16>, vector<8x128xbf16>, vector<8x128xbf16>, vector<8x128xbf16>, vector<8x128xbf16>, vector<8x128xbf16>, vector<8x128xbf16> -> vector<64x128xbf16>
    %c0_52 = arith.constant 0 : index
    %c0_53 = arith.constant 0 : index
    %262 = vector.load %arg8[%c0_52, %c0_53] : memref<128x256xbf16, #tpu.memory_space<vmem>>, vector<128x256xbf16>
    %cst_54 = arith.constant dense<0.000000e+00> : vector<64x256xf32>
    %263 = tpu.matmul %261, %262, %cst_54 {dimension_numbers = #tpu.dot_dimension_numbers<[1], [0], [0], [1], [0, 0, 1, 1], [], []>} : vector<64x128xbf16>, vector<128x256xbf16>, vector<64x256xf32> -> vector<64x256xf32>
    %c0_55 = arith.constant 0 : index
    %c0_56 = arith.constant 0 : index
    %264 = vector.load %arg9[%c0_55, %c0_56] : memref<1x256xf32, #tpu.memory_space<vmem>>, vector<1x256xf32>
    %265 = vector.broadcast %264 : vector<1x256xf32> to vector<64x256xf32>
    %266 = arith.addf %263, %265 : vector<64x256xf32>
    %cst_57 = arith.constant dense<0xFF800000> : vector<64xf32>
    %267 = vector.multi_reduction <maximumf>, %266, %cst_57 [1] : vector<64x256xf32> to vector<64xf32>
    %268 = vector.shape_cast %267 : vector<64xf32> to vector<64x1xf32>
    %269 = vector.broadcast %268 : vector<64x1xf32> to vector<64x256xf32>
    %270 = arith.subf %266, %269 : vector<64x256xf32>
    %271 = math.exp %270 : vector<64x256xf32>
    %cst_58 = arith.constant dense<0.000000e+00> : vector<64xf32>
    %272 = vector.multi_reduction <add>, %271, %cst_58 [1] : vector<64x256xf32> to vector<64xf32>
    %273 = vector.shape_cast %272 : vector<64xf32> to vector<64x1xf32>
    %274 = math.log %273 : vector<64x1xf32>
    %275 = arith.addf %268, %274 : vector<64x1xf32>
    %c0_59 = arith.constant 0 : index
    %c0_60 = arith.constant 0 : index
    %276 = vector.load %arg1[%c0_59, %c0_60] : memref<64x1xi32, #tpu.memory_space<vmem>>, vector<64x1xi32>
    %277 = vector.broadcast %276 : vector<64x1xi32> to vector<64x256xi32>
    %278 = arith.cmpi eq, %1, %277 : vector<64x256xi32>
    %cst_61 = arith.constant 0.000000e+00 : f32
    %279 = vector.broadcast %cst_61 : f32 to vector<64x256xf32>
    %280 = arith.select %278, %266, %279 : vector<64x256xi1>, vector<64x256xf32>
    %cst_62 = arith.constant dense<0.000000e+00> : vector<64xf32>
    %281 = vector.multi_reduction <add>, %280, %cst_62 [1] : vector<64x256xf32> to vector<64xf32>
    %282 = vector.shape_cast %281 : vector<64xf32> to vector<64x1xf32>
    %283 = arith.subf %275, %282 : vector<64x1xf32>
    %c0_63 = arith.constant 0 : index
    %c0_64 = arith.constant 0 : index
    %284 = vector.load %arg12[%c0_63, %c0_64] : memref<64x1xf32, #tpu.memory_space<vmem>>, vector<64x1xf32>
    tpu.vector_store %arg12[%c0_63, %c0_64], %283 {strides = array<i32>} : memref<64x1xf32, #tpu.memory_space<vmem>>, vector<64x1xf32>,
    return
  }
}

</mosaic_0001>

<llo_original>
// kernel: classifier_forward.1
$region0: #{classifier_forward.1}
  #allocation0 [shape = 'u32[]', space=smem, size = 0x4, offset = 0x4, fixed_abs, tag = 'smem constant byte address 0x4 - core index']
  #allocation1 [shape = 'u32[144,128]{1,0:T(1,128)}', space=vmem, size = 0x12000, scoped, tag = 'internal scratch']
  %s0 = inlined_call_operand.vmem [shape: s32[64,1], index: 0, kind: input, shape index: {}]
  %s1 = inlined_call_operand.vmem [shape: s32[64,1], index: 1, kind: input, shape index: {}]
  %s2 = inlined_call_operand.vmem [shape: f32[8,128], index: 2, kind: input, shape index: {}]
  %s3 = inlined_call_operand.vmem [shape: f32[8,128], index: 3, kind: input, shape index: {}]
  %s4 = inlined_call_operand.vmem [shape: bf16[256,128], index: 4, kind: input, shape index: {}]
  %s5 = inlined_call_operand.hbm [shape: bf16[128,512], index: 5, kind: input, shape index: {}]
  %s6 = inlined_call_operand.hbm [shape: bf16[128,512], index: 6, kind: input, shape index: {}]
  %s7 = inlined_call_operand.vmem [shape: f32[1,512], index: 7, kind: input, shape index: {}]
  %s8 = inlined_call_operand.hbm [shape: bf16[128,256], index: 8, kind: input, shape index: {}]
  %s9 = inlined_call_operand.vmem [shape: f32[1,256], index: 9, kind: input, shape index: {}]
  %s10 = inlined_call_operand.hbm [shape: f32[8,128], index: 10, kind: output, shape index: {0}]
  %s11 = inlined_call_operand.hbm [shape: f32[8,128], index: 11, kind: output, shape index: {1}]
  %s12 = inlined_call_operand.vmem [shape: f32[64,1], index: 12, kind: output, shape index: {2}]
  %13 = xla_tuple %s10, %s11, %s12
  %s14 = sld [smem:[#allocation0]]
  $region78: #{classifier_forward.1} parent=0
    _
  %s16 = ssub.s32 1, %s14
  %s17 = scalar_select 0, %s16, %s14
  $region1: #{classifier_forward.1} parent=0
    #allocation2 [shape = 'u8[131072]{0}', space=vmem, size = 0x20000, scoped, tag = 'input window, operand 5, single buffered']
    #allocation3 [shape = 's32[1]{0}', space=sflag, size = 0x4, scoped, tag = 'scoped memory for classifier_forward.1']
    #allocation4 [shape = 's32[1]{0}', space=sflag, size = 0x4, scoped, tag = 'scoped memory for classifier_forward.1']
    #allocation5 [shape = 'u8[131072]{0}', space=vmem, size = 0x20000, scoped, tag = 'input window, operand 6, single buffered']
    #allocation6 [shape = 's32[1]{0}', space=sflag, size = 0x4, scoped, tag = 'scoped memory for classifier_forward.1']
    #allocation7 [shape = 'u8[65536]{0}', space=vmem, size = 0x10000, scoped, tag = 'input window, operand 8, single buffered']
    #allocation8 [shape = 'u8[4096]{0}', space=vmem, size = 0x1000, scoped, tag = 'output window, operand 0, single buffered']
    #allocation9 [shape = 'u8[4096]{0}', space=vmem, size = 0x1000, scoped, tag = 'output window, operand 1, single buffered']
    #allocation10 [shape = 's32[1]{0}', space=sflag, size = 0x4, scoped, tag = 'scoped memory for classifier_forward.1']
    %18 = vsyncpa [#allocation3], 0
    %19 = vsyncpa [#allocation6], 0
    %20 = vsyncpa [#allocation4], 0
    %21 = vsyncpa [#allocation10], 0
    // Predicated region
    $region2: #{classifier_forward.1} parent=1 // pred_check
      _
    $region3: #{classifier_forward.1} parent=1 // pred_check_branch
      %23 = sbr.rel (0) target = $region5
    $region4: #{classifier_forward.1} parent=1 // pred_region
      _
    $region5: #{classifier_forward.1} parent=1 // pred_fallthru
      _
    // Predicated region
    $region6: #{classifier_forward.1} parent=1 // pred_check
      _
    $region7: #{classifier_forward.1} parent=1 // pred_check_branch
      %25 = sbr.rel (0) target = $region9
    $region8: #{classifier_forward.1} parent=1 // pred_region
      _
    $region9: #{classifier_forward.1} parent=1 // pred_fallthru
      _
    // Predicated region
    $region10: #{classifier_forward.1} parent=1 // pred_check
      _
    $region11: #{classifier_forward.1} parent=1 // pred_check_branch
      %27 = sbr.rel (0) target = $region13
    $region12: #{classifier_forward.1} parent=1 // pred_region
      _
    $region13: #{classifier_forward.1} parent=1 // pred_fallthru
      _
    // Predicated region
    $region14: #{classifier_forward.1} parent=1 // pred_check
      _
    $region15: #{classifier_forward.1} parent=1 // pred_check_branch
      %29 = sbr.rel (0) target = $region17
    $region16: #{classifier_forward.1} parent=1 // pred_region
      _
    $region17: #{classifier_forward.1} parent=1 // pred_fallthru
      _
    // Predicated region
    $region18: #{classifier_forward.1} parent=1 // pred_check
      _
    $region19: #{classifier_forward.1} parent=1 // pred_check_branch
      %31 = sbr.rel (0) target = $region21
    $region20: #{classifier_forward.1} parent=1 // pred_region
      _
    $region21: #{classifier_forward.1} parent=1 // pred_fallthru
      _
    // Predicated region
    $region22: #{classifier_forward.1} parent=1 // pred_check
      _
    $region23: #{classifier_forward.1} parent=1 // pred_check_branch
      %33 = sbr.rel (0) target = $region25
    $region24: #{classifier_forward.1} parent=1 // pred_region
      %s35 = ssub.s32 4096, 4096
      %36 = vsyncadd [#allocation3], %s35
      %s37 = sshll.u32 [#allocation2], 4
      %s38 = int_to_ptr.vmem [resolvable:$true] %s37
      %43 = dma.hbm_to_vmem [thread:$0]  %s5, 4096, %s38, [#allocation3], 256, 256, 16
    $region25: #{classifier_forward.1} parent=1 // pred_fallthru
      _
    // Predicated region
    $region26: #{classifier_forward.1} parent=1 // pred_check
      _
    $region27: #{classifier_forward.1} parent=1 // pred_check_branch
      %45 = sbr.rel (0) target = $region29
    $region28: #{classifier_forward.1} parent=1 // pred_region
      %s47 = ssub.s32 4096, 4096
      %48 = vsyncadd [#allocation6], %s47
      %s49 = sshll.u32 [#allocation5], 4
      %s50 = int_to_ptr.vmem [resolvable:$true] %s49
      %55 = dma.hbm_to_vmem [thread:$0]  %s6, 4096, %s50, [#allocation6], 256, 256, 16
    $region29: #{classifier_forward.1} parent=1 // pred_fallthru
      _
    // Predicated region
    $region30: #{classifier_forward.1} parent=1 // pred_check
      _
    $region31: #{classifier_forward.1} parent=1 // pred_check_branch
      %57 = sbr.rel (0) target = $region33
    $region32: #{classifier_forward.1} parent=1 // pred_region
      _
    $region33: #{classifier_forward.1} parent=1 // pred_fallthru
      _
    // Predicated region
    $region34: #{classifier_forward.1} parent=1 // pred_check
      _
    $region35: #{classifier_forward.1} parent=1 // pred_check_branch
      %59 = sbr.rel (0) target = $region37
    $region36: #{classifier_forward.1} parent=1 // pred_region
      %s61 = ssub.s32 2048, 2048
      %62 = vsyncadd [#allocation6], %s61
      %s63 = sshll.u32 [#allocation7], 4
      %s64 = int_to_ptr.vmem [resolvable:$true] %s63
      %69 = dma.hbm_to_vmem [thread:$0]  %s8, 2048, %s64, [#allocation6], 128, 128, 8
    $region37: #{classifier_forward.1} parent=1 // pred_fallthru
      _
    // Predicated region
    $region38: #{classifier_forward.1} parent=1 // pred_check
      _
    $region39: #{classifier_forward.1} parent=1 // pred_check_branch
      %71 = sbr.rel (0) target = $region41
    $region40: #{classifier_forward.1} parent=1 // pred_region
      _
    $region41: #{classifier_forward.1} parent=1 // pred_fallthru
      _
    // Predicated region
    $region42: #{classifier_forward.1} parent=1 // pred_check
      _
    $region43: #{classifier_forward.1} parent=1 // pred_check_branch
      %73 = sbr.rel (0) target = $region45
    $region44: #{classifier_forward.1} parent=1 // pred_region
      %74 = dma.done [#allocation3], 4096
    $region45: #{classifier_forward.1} parent=1 // pred_fallthru
      _
    // Predicated region
    $region46: #{classifier_forward.1} parent=1 // pred_check
      _
    $region47: #{classifier_forward.1} parent=1 // pred_check_branch
      %76 = sbr.rel (0) target = $region49
    $region48: #{classifier_forward.1} parent=1 // pred_region
      %77 = dma.done [#allocation6], 4096
    $region49: #{classifier_forward.1} parent=1 // pred_fallthru
      _
    // Predicated region
    $region50: #{classifier_forward.1} parent=1 // pred_check
      _
    $region51: #{classifier_forward.1} parent=1 // pred_check_branch
      %79 = sbr.rel (0) target = $region53
    $region52: #{classifier_forward.1} parent=1 // pred_region
      %80 = dma.done [#allocation6], 2048
    $region53: #{classifier_forward.1} parent=1 // pred_fallthru
      _
    %v82 = vld [vmem:[%s0] sm:$0xff]
    %v83 = vld [vmem:[%s0 + $0x8] sm:$0xff]
    %v84 = vld [vmem:[%s0 + $0x10] sm:$0xff]
    %v85 = vld [vmem:[%s0 + $0x18] sm:$0xff]
    %v86 = vld [vmem:[%s0 + $0x20] sm:$0xff]
    %v87 = vld [vmem:[%s0 + $0x28] sm:$0xff]
    %v88 = vld [vmem:[%s0 + $0x30] sm:$0xff]
    %v89 = vld [vmem:[%s0 + $0x38] sm:$0xff]
    %v90 = vlaneseq
    %v91 = vand.u32 %v90, 127
    %v92 = vadd.s32 %v91, 128
    %93 = vset.pattern.permute.xlu0 0
    %94 = vperm.xlu0 %93, %v82
    %v95 = vpop.permute.xlu0 %94
    %96 = vset.pattern.permute.xlu0 0
    %97 = vperm.xlu0 %96, %v83
    %v98 = vpop.permute.xlu0 %97
    %99 = vset.pattern.permute.xlu0 0
    %100 = vperm.xlu0 %99, %v84
    %v101 = vpop.permute.xlu0 %100
    %102 = vset.pattern.permute.xlu0 0
    %103 = vperm.xlu0 %102, %v85
    %v104 = vpop.permute.xlu0 %103
    %105 = vset.pattern.permute.xlu0 0
    %106 = vperm.xlu0 %105, %v86
    %v107 = vpop.permute.xlu0 %106
    %108 = vset.pattern.permute.xlu0 0
    %109 = vperm.xlu0 %108, %v87
    %v110 = vpop.permute.xlu0 %109
    %111 = vset.pattern.permute.xlu0 0
    %112 = vperm.xlu0 %111, %v88
    %v113 = vpop.permute.xlu0 %112
    %114 = vset.pattern.permute.xlu0 0
    %115 = vperm.xlu0 %114, %v89
    %v116 = vpop.permute.xlu0 %115
    %vm117 = vcmp.eq.s32.totalorder %v91, %v95
    %vm118 = vcmp.eq.s32.totalorder %v92, %v95
    %vm119 = vcmp.eq.s32.totalorder %v91, %v98
    %vm120 = vcmp.eq.s32.totalorder %v92, %v98
    %vm121 = vcmp.eq.s32.totalorder %v91, %v101
    %vm122 = vcmp.eq.s32.totalorder %v92, %v101
    %vm123 = vcmp.eq.s32.totalorder %v91, %v104
    %vm124 = vcmp.eq.s32.totalorder %v92, %v104
    %vm125 = vcmp.eq.s32.totalorder %v91, %v107
    %vm126 = vcmp.eq.s32.totalorder %v92, %v107
    %vm127 = vcmp.eq.s32.totalorder %v91, %v110
    %vm128 = vcmp.eq.s32.totalorder %v92, %v110
    %vm129 = vcmp.eq.s32.totalorder %v91, %v113
    %vm130 = vcmp.eq.s32.totalorder %v92, %v113
    %vm131 = vcmp.eq.s32.totalorder %v91, %v116
    %vm132 = vcmp.eq.s32.totalorder %v92, %v116
    %v133 = vsel %vm117, 1.0, 0.0
    %v134 = vsel %vm118, 1.0, 0.0
    %v135 = vsel %vm119, 1.0, 0.0
    %v136 = vsel %vm120, 1.0, 0.0
    %v137 = vsel %vm121, 1.0, 0.0
    %v138 = vsel %vm122, 1.0, 0.0
    %v139 = vsel %vm123, 1.0, 0.0
    %v140 = vsel %vm124, 1.0, 0.0
    %v141 = vsel %vm125, 1.0, 0.0
    %v142 = vsel %vm126, 1.0, 0.0
    %v143 = vsel %vm127, 1.0, 0.0
    %v144 = vsel %vm128, 1.0, 0.0
    %v145 = vsel %vm129, 1.0, 0.0
    %v146 = vsel %vm130, 1.0, 0.0
    %v147 = vsel %vm131, 1.0, 0.0
    %v148 = vsel %vm132, 1.0, 0.0
    %v149 = vpack.c.bf16 %v135, %v133
    %v150 = vpack.c.bf16 %v136, %v134
    %v151 = vpack.c.bf16 %v139, %v137
    %v152 = vpack.c.bf16 %v140, %v138
    %v153 = vpack.c.bf16 %v143, %v141
    %v154 = vpack.c.bf16 %v144, %v142
    %v155 = vpack.c.bf16 %v147, %v145
    %v156 = vpack.c.bf16 %v148, %v146
    %v157 = vld [vmem:[%s4] sm:$0xf]
    %v158 = vld [vmem:[%s4 + $0x4] sm:$0xf]
    %v159 = vld [vmem:[%s4 + $0x8] sm:$0xf]
    %v160 = vld [vmem:[%s4 + $0xc] sm:$0xf]
    %v161 = vld [vmem:[%s4 + $0x10] sm:$0xf]
    %v162 = vld [vmem:[%s4 + $0x14] sm:$0xf]
    %v163 = vld [vmem:[%s4 + $0x18] sm:$0xf]
    %v164 = vld [vmem:[%s4 + $0x1c] sm:$0xf]
    %v165 = vld [vmem:[%s4 + $0x20] sm:$0xf]
    %v166 = vld [vmem:[%s4 + $0x24] sm:$0xf]
    %v167 = vld [vmem:[%s4 + $0x28] sm:$0xf]
    %v168 = vld [vmem:[%s4 + $0x2c] sm:$0xf]
    %v169 = vld [vmem:[%s4 + $0x30] sm:$0xf]
    %v170 = vld [vmem:[%s4 + $0x34] sm:$0xf]
    %v171 = vld [vmem:[%s4 + $0x38] sm:$0xf]
    %v172 = vld [vmem:[%s4 + $0x3c] sm:$0xf]
    %v173 = vld [vmem:[%s4 + $0x40] sm:$0xf]
    %v174 = vld [vmem:[%s4 + $0x44] sm:$0xf]
    %v175 = vld [vmem:[%s4 + $0x48] sm:$0xf]
    %v176 = vld [vmem:[%s4 + $0x4c] sm:$0xf]
    %v177 = vld [vmem:[%s4 + $0x50] sm:$0xf]
    %v178 = vld [vmem:[%s4 + $0x54] sm:$0xf]
    %v179 = vld [vmem:[%s4 + $0x58] sm:$0xf]
    %v180 = vld [vmem:[%s4 + $0x5c] sm:$0xf]
    %v181 = vld [vmem:[%s4 + $0x60] sm:$0xf]
    %v182 = vld [vmem:[%s4 + $0x64] sm:$0xf]
    %v183 = vld [vmem:[%s4 + $0x68] sm:$0xf]
    %v184 = vld [vmem:[%s4 + $0x6c] sm:$0xf]
    %v185 = vld [vmem:[%s4 + $0x70] sm:$0xf]
    %v186 = vld [vmem:[%s4 + $0x74] sm:$0xf]
    %v187 = vld [vmem:[%s4 + $0x78] sm:$0xf]
    %v188 = vld [vmem:[%s4 + $0x7c] sm:$0xf]
    %v221 = vunpack.c.l.b16 %v157
    %v222 = vunpack.c.l.b16 %v158
    %v223 = vunpack.c.l.b16 %v159
    %v224 = vunpack.c.l.b16 %v160
    %v225 = vunpack.c.l.b16 %v161
    %v226 = vunpack.c.l.b16 %v162
    %v227 = vunpack.c.l.b16 %v163
    %v228 = vunpack.c.l.b16 %v164
    %v229 = vunpack.c.l.b16 %v165
    %v230 = vunpack.c.l.b16 %v166
    %v231 = vunpack.c.l.b16 %v167
    %v232 = vunpack.c.l.b16 %v168
    %v233 = vunpack.c.l.b16 %v169
    %v234 = vunpack.c.l.b16 %v170
    %v235 = vunpack.c.l.b16 %v171
    %v236 = vunpack.c.l.b16 %v172
    %v237 = vunpack.c.l.b16 %v173
    %v238 = vunpack.c.l.b16 %v174
    %v239 = vunpack.c.l.b16 %v175
    %v240 = vunpack.c.l.b16 %v176
    %v241 = vunpack.c.l.b16 %v177
    %v242 = vunpack.c.l.b16 %v178
    %v243 = vunpack.c.l.b16 %v179
    %v244 = vunpack.c.l.b16 %v180
    %v245 = vunpack.c.l.b16 %v181
    %v246 = vunpack.c.l.b16 %v182
    %v247 = vunpack.c.l.b16 %v183
    %v248 = vunpack.c.l.b16 %v184
    %v249 = vunpack.c.l.b16 %v185
    %v250 = vunpack.c.l.b16 %v186
    %v251 = vunpack.c.l.b16 %v187
    %v252 = vunpack.c.l.b16 %v188
    %v253 = vpack.c.b16 %v222, %v221
    %v254 = vpack.c.b16 %v224, %v223
    %v255 = vpack.c.b16 %v226, %v225
    %v256 = vpack.c.b16 %v228, %v227
    %v257 = vpack.c.b16 %v230, %v229
    %v258 = vpack.c.b16 %v232, %v231
    %v259 = vpack.c.b16 %v234, %v233
    %v260 = vpack.c.b16 %v236, %v235
    %v261 = vpack.c.b16 %v238, %v237
    %v262 = vpack.c.b16 %v240, %v239
    %v263 = vpack.c.b16 %v242, %v241
    %v264 = vpack.c.b16 %v244, %v243
    %v265 = vpack.c.b16 %v246, %v245
    %v266 = vpack.c.b16 %v248, %v247
    %v267 = vpack.c.b16 %v250, %v249
    %v268 = vpack.c.b16 %v252, %v251
    %285 = vmatprep.subr.bf16.mxu0 0
    %286 = vmatpush1.bf16.msra.mxu0 %v260
    %287 = vmatprep.subr.bf16.mxu0 0
    %288 = vmatpush1.bf16.msra.mxu0 %v259
    %289 = vmatprep.subr.bf16.mxu0 0
    %290 = vmatpush1.bf16.msra.mxu0 %v258
    %291 = vmatprep.subr.bf16.mxu0 0
    %292 = vmatpush1.bf16.msra.mxu0 %v257
    %293 = vmatprep.subr.bf16.mxu0 0
    %294 = vmatpush1.bf16.msra.mxu0 %v256
    %295 = vmatprep.subr.bf16.mxu0 0
    %296 = vmatpush1.bf16.msra.mxu0 %v255
    %297 = vmatprep.subr.bf16.mxu0 0
    %298 = vmatpush1.bf16.msra.mxu0 %v254
    %299 = vmatprep.subr.bf16.mxu0 0
    %300 = vmatpush1.bf16.msra.mxu0 %v253
    %301 = vmatprep.subr.bf16.mxu0 0
    %302 = vmatpush2.bf16.msra.mxu0 %v268
    %303 = vmatprep.subr.bf16.mxu0 0
    %304 = vmatpush2.bf16.msra.mxu0 %v267
    %305 = vmatprep.subr.bf16.mxu0 0
    %306 = vmatpush2.bf16.msra.mxu0 %v266
    %307 = vmatprep.subr.bf16.mxu0 0
    %308 = vmatpush2.bf16.msra.mxu0 %v265
    %309 = vmatprep.subr.bf16.mxu0 0
    %310 = vmatpush2.bf16.msra.mxu0 %v264
    %311 = vmatprep.subr.bf16.mxu0 0
    %312 = vmatpush2.bf16.msra.mxu0 %v263
    %313 = vmatprep.subr.bf16.mxu0 0
    %314 = vmatpush2.bf16.msra.mxu0 %v262
    %315 = vmatprep.subr.bf16.mxu0 0
    %316 = vmatpush2.bf16.msra.mxu0 %v261
    %317 = vmatprep.mubr.bf16.mxu0 %v150
    %318 = vmatmul.mubr.bf16.gmra.mxu0 %v149
    %v319 = vpop.f32.mrf.mxu0
    %v320 = vadd.f32 0.0, %v319
    %v321 = vpop.f32.mrf.mxu0
    %v322 = vpop.f32.mrf.mxu0
    %v323 = vadd.f32 0.0, %v322
    %v324 = vpop.f32.mrf.mxu0
    %325 = vmatprep.mubr.bf16.mxu0 %v152
    %326 = vmatmul.mubr.bf16.gmra.mxu0 %v151
    %v327 = vpop.f32.mrf.mxu0
    %v328 = vadd.f32 0.0, %v327
    %v329 = vpop.f32.mrf.mxu0
    %v330 = vpop.f32.mrf.mxu0
    %v331 = vadd.f32 0.0, %v330
    %v332 = vpop.f32.mrf.mxu0
    %333 = vmatprep.mubr.bf16.mxu0 %v154
    %334 = vmatmul.mubr.bf16.gmra.mxu0 %v153
    %v335 = vpop.f32.mrf.mxu0
    %v336 = vadd.f32 0.0, %v335
    %v337 = vpop.f32.mrf.mxu0
    %v338 = vpop.f32.mrf.mxu0
    %v339 = vadd.f32 0.0, %v338
    %v340 = vpop.f32.mrf.mxu0
    %341 = vmatprep.mubr.bf16.mxu0 %v156
    %342 = vmatmul.mubr.bf16.gmra.mxu0 %v155
    %v343 = vpop.f32.mrf.mxu0
    %v344 = vadd.f32 0.0, %v343
    %v345 = vpop.f32.mrf.mxu0
    %v346 = vpop.f32.mrf.mxu0
    %v347 = vadd.f32 0.0, %v346
    %v348 = vpop.f32.mrf.mxu0
    %349 = vdwg.mxu0
    %v350 = vpack.c.bf16 %v323, %v320
    %v351 = vpack.c.bf16 %v331, %v328
    %v352 = vpack.c.bf16 %v339, %v336
    %v353 = vpack.c.bf16 %v347, %v344
    %v354 = vld [vmem:[#allocation2] sm:$0xff]
    %v355 = vld [vmem:[#allocation2 + $0x8] sm:$0xff]
    %v356 = vld [vmem:[#allocation2 + $0x10] sm:$0xff]
    %v357 = vld [vmem:[#allocation2 + $0x18] sm:$0xff]
    %v358 = vld [vmem:[#allocation2 + $0x20] sm:$0xff]
    %v359 = vld [vmem:[#allocation2 + $0x28] sm:$0xff]
    %v360 = vld [vmem:[#allocation2 + $0x30] sm:$0xff]
    %v361 = vld [vmem:[#allocation2 + $0x38] sm:$0xff]
    %v362 = vld [vmem:[#allocation2 + $0x40] sm:$0xff]
    %v363 = vld [vmem:[#allocation2 + $0x48] sm:$0xff]
    %v364 = vld [vmem:[#allocation2 + $0x50] sm:$0xff]
    %v365 = vld [vmem:[#allocation2 + $0x58] sm:$0xff]
    %v366 = vld [vmem:[#allocation2 + $0x60] sm:$0xff]
    %v367 = vld [vmem:[#allocation2 + $0x68] sm:$0xff]
    %v368 = vld [vmem:[#allocation2 + $0x70] sm:$0xff]
    %v369 = vld [vmem:[#allocation2 + $0x78] sm:$0xff]
    %v370 = vld [vmem:[#allocation2 + $0x80] sm:$0xff]
    %v371 = vld [vmem:[#allocation2 + $0x88] sm:$0xff]
    %v372 = vld [vmem:[#allocation2 + $0x90] sm:$0xff]
    %v373 = vld [vmem:[#allocation2 + $0x98] sm:$0xff]
    %v374 = vld [vmem:[#allocation2 + $0xa0] sm:$0xff]
    %v375 = vld [vmem:[#allocation2 + $0xa8] sm:$0xff]
    %v376 = vld [vmem:[#allocation2 + $0xb0] sm:$0xff]
    %v377 = vld [vmem:[#allocation2 + $0xb8] sm:$0xff]
    %v378 = vld [vmem:[#allocation2 + $0xc0] sm:$0xff]
    %v379 = vld [vmem:[#allocation2 + $0xc8] sm:$0xff]
    %v380 = vld [vmem:[#allocation2 + $0xd0] sm:$0xff]
    %v381 = vld [vmem:[#allocation2 + $0xd8] sm:$0xff]
    %v382 = vld [vmem:[#allocation2 + $0xe0] sm:$0xff]
    %v383 = vld [vmem:[#allocation2 + $0xe8] sm:$0xff]
    %v384 = vld [vmem:[#allocation2 + $0xf0] sm:$0xff]
    %v385 = vld [vmem:[#allocation2 + $0xf8] sm:$0xff]
    %v386 = vld [vmem:[%s7] sm:$0xf]
    %v388 = vlaneseq
    %v389 = vshrl.u32 %v388, 7
    %v390 = vsub.s32 0, %v389
    %v391 = vrot.slane %v386, %v390
    %v392 = vlaneseq
    %v393 = vshrl.u32 %v392, 7
    %v394 = vsub.s32 1, %v393
    %v395 = vrot.slane %v386, %v394
    %v396 = vlaneseq
    %v397 = vshrl.u32 %v396, 7
    %v398 = vsub.s32 2, %v397
    %v399 = vrot.slane %v386, %v398
    %v400 = vlaneseq
    %v401 = vshrl.u32 %v400, 7
    %v402 = vsub.s32 3, %v401
    %v403 = vrot.slane %v386, %v402
    %v440 = vunpack.c.l.b16 %v354
    %v441 = vunpack.c.h.b16 %v354
    %v442 = vunpack.c.l.b16 %v355
    %v443 = vunpack.c.h.b16 %v355
    %v444 = vunpack.c.l.b16 %v356
    %v445 = vunpack.c.h.b16 %v356
    %v446 = vunpack.c.l.b16 %v357
    %v447 = vunpack.c.h.b16 %v357
    %v448 = vunpack.c.l.b16 %v358
    %v449 = vunpack.c.h.b16 %v358
    %v450 = vunpack.c.l.b16 %v359
    %v451 = vunpack.c.h.b16 %v359
    %v452 = vunpack.c.l.b16 %v360
    %v453 = vunpack.c.h.b16 %v360
    %v454 = vunpack.c.l.b16 %v361
    %v455 = vunpack.c.h.b16 %v361
    %v456 = vunpack.c.l.b16 %v362
    %v457 = vunpack.c.h.b16 %v362
    %v458 = vunpack.c.l.b16 %v363
    %v459 = vunpack.c.h.b16 %v363
    %v460 = vunpack.c.l.b16 %v364
    %v461 = vunpack.c.h.b16 %v364
    %v462 = vunpack.c.l.b16 %v365
    %v463 = vunpack.c.h.b16 %v365
    %v464 = vunpack.c.l.b16 %v366
    %v465 = vunpack.c.h.b16 %v366
    %v466 = vunpack.c.l.b16 %v367
    %v467 = vunpack.c.h.b16 %v367
    %v468 = vunpack.c.l.b16 %v368
    %v469 = vunpack.c.h.b16 %v368
    %v470 = vunpack.c.l.b16 %v369
    %v471 = vunpack.c.h.b16 %v369
    %v472 = vunpack.c.l.b16 %v370
    %v473 = vunpack.c.h.b16 %v370
    %v474 = vunpack.c.l.b16 %v371
    %v475 = vunpack.c.h.b16 %v371
    %v476 = vunpack.c.l.b16 %v372
    %v477 = vunpack.c.h.b16 %v372
    %v478 = vunpack.c.l.b16 %v373
    %v479 = vunpack.c.h.b16 %v373
    %v480 = vunpack.c.l.b16 %v374
    %v481 = vunpack.c.h.b16 %v374
    %v482 = vunpack.c.l.b16 %v375
    %v483 = vunpack.c.h.b16 %v375
    %v484 = vunpack.c.l.b16 %v376
    %v485 = vunpack.c.h.b16 %v376
    %v486 = vunpack.c.l.b16 %v377
    %v487 = vunpack.c.h.b16 %v377
    %v488 = vunpack.c.l.b16 %v378
    %v489 = vunpack.c.h.b16 %v378
    %v490 = vunpack.c.l.b16 %v379
    %v491 = vunpack.c.h.b16 %v379
    %v492 = vunpack.c.l.b16 %v380
    %v493 = vunpack.c.h.b16 %v380
    %v494 = vunpack.c.l.b16 %v381
    %v495 = vunpack.c.h.b16 %v381
    %v496 = vunpack.c.l.b16 %v382
    %v497 = vunpack.c.h.b16 %v382
    %v498 = vunpack.c.l.b16 %v383
    %v499 = vunpack.c.h.b16 %v383
    %v500 = vunpack.c.l.b16 %v384
    %v501 = vunpack.c.h.b16 %v384
    %v502 = vunpack.c.l.b16 %v385
    %v503 = vunpack.c.h.b16 %v385
    %v504 = vpack.c.b16 %v444, %v440
    %v505 = vpack.c.b16 %v445, %v441
    %v506 = vpack.c.b16 %v446, %v442
    %v507 = vpack.c.b16 %v447, %v443
    %v508 = vpack.c.b16 %v452, %v448
    %v509 = vpack.c.b16 %v453, %v449
    %v510 = vpack.c.b16 %v454, %v450
    %v511 = vpack.c.b16 %v455, %v451
    %v512 = vpack.c.b16 %v460, %v456
    %v513 = vpack.c.b16 %v461, %v457
    %v514 = vpack.c.b16 %v462, %v458
    %v515 = vpack.c.b16 %v463, %v459
    %v516 = vpack.c.b16 %v468, %v464
    %v517 = vpack.c.b16 %v469, %v465
    %v518 = vpack.c.b16 %v470, %v466
    %v519 = vpack.c.b16 %v471, %v467
    %v520 = vpack.c.b16 %v476, %v472
    %v521 = vpack.c.b16 %v477, %v473
    %v522 = vpack.c.b16 %v478, %v474
    %v523 = vpack.c.b16 %v479, %v475
    %v524 = vpack.c.b16 %v484, %v480
    %v525 = vpack.c.b16 %v485, %v481
    %v526 = vpack.c.b16 %v486, %v482
    %v527 = vpack.c.b16 %v487, %v483
    %v528 = vpack.c.b16 %v492, %v488
    %v529 = vpack.c.b16 %v493, %v489
    %v530 = vpack.c.b16 %v494, %v490
    %v531 = vpack.c.b16 %v495, %v491
    %v532 = vpack.c.b16 %v500, %v496
    %v533 = vpack.c.b16 %v501, %v497
    %v534 = vpack.c.b16 %v502, %v498
    %v535 = vpack.c.b16 %v503, %v499
    %568 = vmatprep.subr.bf16.mxu0 %v533
    %569 = vmatpush1.bf16.msra.mxu0 %v532
    %570 = vmatprep.subr.bf16.mxu0 %v529
    %571 = vmatpush1.bf16.msra.mxu0 %v528
    %572 = vmatprep.subr.bf16.mxu0 %v525
    %573 = vmatpush1.bf16.msra.mxu0 %v524
    %574 = vmatprep.subr.bf16.mxu0 %v521
    %575 = vmatpush1.bf16.msra.mxu0 %v520
    %576 = vmatprep.subr.bf16.mxu0 %v517
    %577 = vmatpush1.bf16.msra.mxu0 %v516
    %578 = vmatprep.subr.bf16.mxu0 %v513
    %579 = vmatpush1.bf16.msra.mxu0 %v512
    %580 = vmatprep.subr.bf16.mxu0 %v509
    %581 = vmatpush1.bf16.msra.mxu0 %v508
    %582 = vmatprep.subr.bf16.mxu0 %v505
    %583 = vmatpush1.bf16.msra.mxu0 %v504
    %584 = vmatprep.subr.bf16.mxu0 0
    %585 = vmatpush2.bf16.msra.mxu0 0
    %586 = vmatprep.subr.bf16.mxu0 0
    %587 = vmatpush2.bf16.msra.mxu0 0
    %588 = vmatprep.subr.bf16.mxu0 0
    %589 = vmatpush2.bf16.msra.mxu0 0
    %590 = vmatprep.subr.bf16.mxu0 0
    %591 = vmatpush2.bf16.msra.mxu0 0
    %592 = vmatprep.subr.bf16.mxu0 0
    %593 = vmatpush2.bf16.msra.mxu0 0
    %594 = vmatprep.subr.bf16.mxu0 0
    %595 = vmatpush2.bf16.msra.mxu0 0
    %596 = vmatprep.subr.bf16.mxu0 0
    %597 = vmatpush2.bf16.msra.mxu0 0
    %598 = vmatprep.subr.bf16.mxu0 0
    %599 = vmatpush2.bf16.msra.mxu0 0
    %600 = vmatprep.mubr.bf16.mxu0 0
    %601 = vmatmul.mubr.bf16.gmra.mxu0 %v350
    %v602 = vpop.f32.mrf.mxu0
    %v603 = vadd.f32 %v391, %v602
    %v604 = vpop.f32.mrf.mxu0
    %v605 = vadd.f32 %v395, %v604
    %v606 = vpop.f32.mrf.mxu0
    %v607 = vadd.f32 %v391, %v606
    %v608 = vpop.f32.mrf.mxu0
    %v609 = vadd.f32 %v395, %v608
    %610 = vmatprep.mubr.bf16.mxu0 0
    %611 = vmatmul.mubr.bf16.gmra.mxu0 %v351
    %v612 = vpop.f32.mrf.mxu0
    %v613 = vadd.f32 %v391, %v612
    %v614 = vpop.f32.mrf.mxu0
    %v615 = vadd.f32 %v395, %v614
    %v616 = vpop.f32.mrf.mxu0
    %v617 = vadd.f32 %v391, %v616
    %v618 = vpop.f32.mrf.mxu0
    %v619 = vadd.f32 %v395, %v618
    %620 = vmatprep.mubr.bf16.mxu0 0
    %621 = vmatmul.mubr.bf16.gmra.mxu0 %v352
    %v622 = vpop.f32.mrf.mxu0
    %v623 = vadd.f32 %v391, %v622
    %v624 = vpop.f32.mrf.mxu0
    %v625 = vadd.f32 %v395, %v624
    %v626 = vpop.f32.mrf.mxu0
    %v627 = vadd.f32 %v391, %v626
    %v628 = vpop.f32.mrf.mxu0
    %v629 = vadd.f32 %v395, %v628
    %630 = vmatprep.mubr.bf16.mxu0 0
    %631 = vmatmul.mubr.bf16.gmra.mxu0 %v353
    %v632 = vpop.f32.mrf.mxu0
    %v633 = vadd.f32 %v391, %v632
    %v634 = vpop.f32.mrf.mxu0
    %v635 = vadd.f32 %v395, %v634
    %v636 = vpop.f32.mrf.mxu0
    %v637 = vadd.f32 %v391, %v636
    %v638 = vpop.f32.mrf.mxu0
    %v639 = vadd.f32 %v395, %v638
    %640 = vdwg.mxu0
    %641 = vmatprep.subr.bf16.mxu0 %v535
    %642 = vmatpush1.bf16.msra.mxu0 %v534
    %643 = vmatprep.subr.bf16.mxu0 %v531
    %644 = vmatpush1.bf16.msra.mxu0 %v530
    %645 = vmatprep.subr.bf16.mxu0 %v527
    %646 = vmatpush1.bf16.msra.mxu0 %v526
    %647 = vmatprep.subr.bf16.mxu0 %v523
    %648 = vmatpush1.bf16.msra.mxu0 %v522
    %649 = vmatprep.subr.bf16.mxu0 %v519
    %650 = vmatpush1.bf16.msra.mxu0 %v518
    %651 = vmatprep.subr.bf16.mxu0 %v515
    %652 = vmatpush1.bf16.msra.mxu0 %v514
    %653 = vmatprep.subr.bf16.mxu0 %v511
    %654 = vmatpush1.bf16.msra.mxu0 %v510
    %655 = vmatprep.subr.bf16.mxu0 %v507
    %656 = vmatpush1.bf16.msra.mxu0 %v506
    %657 = vmatprep.subr.bf16.mxu0 0
    %658 = vmatpush2.bf16.msra.mxu0 0
    %659 = vmatprep.subr.bf16.mxu0 0
    %660 = vmatpush2.bf16.msra.mxu0 0
    %661 = vmatprep.subr.bf16.mxu0 0
    %662 = vmatpush2.bf16.msra.mxu0 0
    %663 = vmatprep.subr.bf16.mxu0 0
    %664 = vmatpush2.bf16.msra.mxu0 0
    %665 = vmatprep.subr.bf16.mxu0 0
    %666 = vmatpush2.bf16.msra.mxu0 0
    %667 = vmatprep.subr.bf16.mxu0 0
    %668 = vmatpush2.bf16.msra.mxu0 0
    %669 = vmatprep.subr.bf16.mxu0 0
    %670 = vmatpush2.bf16.msra.mxu0 0
    %671 = vmatprep.subr.bf16.mxu0 0
    %672 = vmatpush2.bf16.msra.mxu0 0
    %673 = vmatprep.mubr.bf16.mxu0 0
    %674 = vmatmul.mubr.bf16.gmra.mxu0 %v350
    %v675 = vpop.f32.mrf.mxu0
    %v676 = vadd.f32 %v399, %v675
    %v677 = vpop.f32.mrf.mxu0
    %v678 = vadd.f32 %v403, %v677
    %v679 = vpop.f32.mrf.mxu0
    %v680 = vadd.f32 %v399, %v679
    %v681 = vpop.f32.mrf.mxu0
    %v682 = vadd.f32 %v403, %v681
    %683 = vmatprep.mubr.bf16.mxu0 0
    %684 = vmatmul.mubr.bf16.gmra.mxu0 %v351
    %v685 = vpop.f32.mrf.mxu0
    %v686 = vadd.f32 %v399, %v685
    %v687 = vpop.f32.mrf.mxu0
    %v688 = vadd.f32 %v403, %v687
    %v689 = vpop.f32.mrf.mxu0
    %v690 = vadd.f32 %v399, %v689
    %v691 = vpop.f32.mrf.mxu0
    %v692 = vadd.f32 %v403, %v691
    %693 = vmatprep.mubr.bf16.mxu0 0
    %694 = vmatmul.mubr.bf16.gmra.mxu0 %v352
    %v695 = vpop.f32.mrf.mxu0
    %v696 = vadd.f32 %v399, %v695
    %v697 = vpop.f32.mrf.mxu0
    %v698 = vadd.f32 %v403, %v697
    %v699 = vpop.f32.mrf.mxu0
    %v700 = vadd.f32 %v399, %v699
    %v701 = vpop.f32.mrf.mxu0
    %v702 = vadd.f32 %v403, %v701
    %703 = vmatprep.mubr.bf16.mxu0 0
    %704 = vmatmul.mubr.bf16.gmra.mxu0 %v353
    %v705 = vpop.f32.mrf.mxu0
    %v706 = vadd.f32 %v399, %v705
    %v707 = vpop.f32.mrf.mxu0
    %v708 = vadd.f32 %v403, %v707
    %v709 = vpop.f32.mrf.mxu0
    %v710 = vadd.f32 %v399, %v709
    %v711 = vpop.f32.mrf.mxu0
    %v712 = vadd.f32 %v403, %v711
    %713 = vdwg.mxu0
    %v714 = vld [vmem:[#allocation5] sm:$0xff]
    %v715 = vld [vmem:[#allocation5 + $0x8] sm:$0xff]
    %v716 = vld [vmem:[#allocation5 + $0x10] sm:$0xff]
    %v717 = vld [vmem:[#allocation5 + $0x18] sm:$0xff]
    %v718 = vld [vmem:[#allocation5 + $0x20] sm:$0xff]
    %v719 = vld [vmem:[#allocation5 + $0x28] sm:$0xff]
    %v720 = vld [vmem:[#allocation5 + $0x30] sm:$0xff]
    %v721 = vld [vmem:[#allocation5 + $0x38] sm:$0xff]
    %v722 = vld [vmem:[#allocation5 + $0x40] sm:$0xff]
    %v723 = vld [vmem:[#allocation5 + $0x48] sm:$0xff]
    %v724 = vld [vmem:[#allocation5 + $0x50] sm:$0xff]
    %v725 = vld [vmem:[#allocation5 + $0x58] sm:$0xff]
    %v726 = vld [vmem:[#allocation5 + $0x60] sm:$0xff]
    %v727 = vld [vmem:[#allocation5 + $0x68] sm:$0xff]
    %v728 = vld [vmem:[#allocation5 + $0x70] sm:$0xff]
    %v729 = vld [vmem:[#allocation5 + $0x78] sm:$0xff]
    %v730 = vld [vmem:[#allocation5 + $0x80] sm:$0xff]
    %v731 = vld [vmem:[#allocation5 + $0x88] sm:$0xff]
    %v732 = vld [vmem:[#allocation5 + $0x90] sm:$0xff]
    %v733 = vld [vmem:[#allocation5 + $0x98] sm:$0xff]
    %v734 = vld [vmem:[#allocation5 + $0xa0] sm:$0xff]
    %v735 = vld [vmem:[#allocation5 + $0xa8] sm:$0xff]
    %v736 = vld [vmem:[#allocation5 + $0xb0] sm:$0xff]
    %v737 = vld [vmem:[#allocation5 + $0xb8] sm:$0xff]
    %v738 = vld [vmem:[#allocation5 + $0xc0] sm:$0xff]
    %v739 = vld [vmem:[#allocation5 + $0xc8] sm:$0xff]
    %v740 = vld [vmem:[#allocation5 + $0xd0] sm:$0xff]
    %v741 = vld [vmem:[#allocation5 + $0xd8] sm:$0xff]
    %v742 = vld [vmem:[#allocation5 + $0xe0] sm:$0xff]
    %v743 = vld [vmem:[#allocation5 + $0xe8] sm:$0xff]
    %v744 = vld [vmem:[#allocation5 + $0xf0] sm:$0xff]
    %v745 = vld [vmem:[#allocation5 + $0xf8] sm:$0xff]
    %v746 = vld [vmem:[%s2] sm:$0xff]
    %v747 = vld [vmem:[%s3] sm:$0xff]
    %v748 = vpack.c.bf16 %v746, %v746
    %v781 = vunpack.c.l.b16 %v714
    %v782 = vunpack.c.h.b16 %v714
    %v783 = vunpack.c.l.b16 %v715
    %v784 = vunpack.c.h.b16 %v715
    %v785 = vunpack.c.l.b16 %v716
    %v786 = vunpack.c.h.b16 %v716
    %v787 = vunpack.c.l.b16 %v717
    %v788 = vunpack.c.h.b16 %v717
    %v789 = vunpack.c.l.b16 %v718
    %v790 = vunpack.c.h.b16 %v718
    %v791 = vunpack.c.l.b16 %v719
    %v792 = vunpack.c.h.b16 %v719
    %v793 = vunpack.c.l.b16 %v720
    %v794 = vunpack.c.h.b16 %v720
    %v795 = vunpack.c.l.b16 %v721
    %v796 = vunpack.c.h.b16 %v721
    %v797 = vunpack.c.l.b16 %v722
    %v798 = vunpack.c.h.b16 %v722
    %v799 = vunpack.c.l.b16 %v723
    %v800 = vunpack.c.h.b16 %v723
    %v801 = vunpack.c.l.b16 %v724
    %v802 = vunpack.c.h.b16 %v724
    %v803 = vunpack.c.l.b16 %v725
    %v804 = vunpack.c.h.b16 %v725
    %v805 = vunpack.c.l.b16 %v726
    %v806 = vunpack.c.h.b16 %v726
    %v807 = vunpack.c.l.b16 %v727
    %v808 = vunpack.c.h.b16 %v727
    %v809 = vunpack.c.l.b16 %v728
    %v810 = vunpack.c.h.b16 %v728
    %v811 = vunpack.c.l.b16 %v729
    %v812 = vunpack.c.h.b16 %v729
    %v813 = vunpack.c.l.b16 %v730
    %v814 = vunpack.c.h.b16 %v730
    %v815 = vunpack.c.l.b16 %v731
    %v816 = vunpack.c.h.b16 %v731
    %v817 = vunpack.c.l.b16 %v732
    %v818 = vunpack.c.h.b16 %v732
    %v819 = vunpack.c.l.b16 %v733
    %v820 = vunpack.c.h.b16 %v733
    %v821 = vunpack.c.l.b16 %v734
    %v822 = vunpack.c.h.b16 %v734
    %v823 = vunpack.c.l.b16 %v735
    %v824 = vunpack.c.h.b16 %v735
    %v825 = vunpack.c.l.b16 %v736
    %v826 = vunpack.c.h.b16 %v736
    %v827 = vunpack.c.l.b16 %v737
    %v828 = vunpack.c.h.b16 %v737
    %v829 = vunpack.c.l.b16 %v738
    %v830 = vunpack.c.h.b16 %v738
    %v831 = vunpack.c.l.b16 %v739
    %v832 = vunpack.c.h.b16 %v739
    %v833 = vunpack.c.l.b16 %v740
    %v834 = vunpack.c.h.b16 %v740
    %v835 = vunpack.c.l.b16 %v741
    %v836 = vunpack.c.h.b16 %v741
    %v837 = vunpack.c.l.b16 %v742
    %v838 = vunpack.c.h.b16 %v742
    %v839 = vunpack.c.l.b16 %v743
    %v840 = vunpack.c.h.b16 %v743
    %v841 = vunpack.c.l.b16 %v744
    %v842 = vunpack.c.h.b16 %v744
    %v843 = vunpack.c.l.b16 %v745
    %v844 = vunpack.c.h.b16 %v745
    %v845 = vpack.c.b16 %v785, %v781
    %v846 = vpack.c.b16 %v786, %v782
    %v847 = vpack.c.b16 %v787, %v783
    %v848 = vpack.c.b16 %v788, %v784
    %v849 = vpack.c.b16 %v793, %v789
    %v850 = vpack.c.b16 %v794, %v790
    %v851 = vpack.c.b16 %v795, %v791
    %v852 = vpack.c.b16 %v796, %v792
    %v853 = vpack.c.b16 %v801, %v797
    %v854 = vpack.c.b16 %v802, %v798
    %v855 = vpack.c.b16 %v803, %v799
    %v856 = vpack.c.b16 %v804, %v800
    %v857 = vpack.c.b16 %v809, %v805
    %v858 = vpack.c.b16 %v810, %v806
    %v859 = vpack.c.b16 %v811, %v807
    %v860 = vpack.c.b16 %v812, %v808
    %v861 = vpack.c.b16 %v817, %v813
    %v862 = vpack.c.b16 %v818, %v814
    %v863 = vpack.c.b16 %v819, %v815
    %v864 = vpack.c.b16 %v820, %v816
    %v865 = vpack.c.b16 %v825, %v821
    %v866 = vpack.c.b16 %v826, %v822
    %v867 = vpack.c.b16 %v827, %v823
    %v868 = vpack.c.b16 %v828, %v824
    %v869 = vpack.c.b16 %v833, %v829
    %v870 = vpack.c.b16 %v834, %v830
    %v871 = vpack.c.b16 %v835, %v831
    %v872 = vpack.c.b16 %v836, %v832
    %v873 = vpack.c.b16 %v841, %v837
    %v874 = vpack.c.b16 %v842, %v838
    %v875 = vpack.c.b16 %v843, %v839
    %v876 = vpack.c.b16 %v844, %v840
    %909 = vmatprep.subr.bf16.mxu0 %v874
    %910 = vmatpush1.bf16.msra.mxu0 %v873
    %911 = vmatprep.subr.bf16.mxu0 %v870
    %912 = vmatpush1.bf16.msra.mxu0 %v869
    %913 = vmatprep.subr.bf16.mxu0 %v866
    %914 = vmatpush1.bf16.msra.mxu0 %v865
    %915 = vmatprep.subr.bf16.mxu0 %v862
    %916 = vmatpush1.bf16.msra.mxu0 %v861
    %917 = vmatprep.subr.bf16.mxu0 %v858
    %918 = vmatpush1.bf16.msra.mxu0 %v857
    %919 = vmatprep.subr.bf16.mxu0 %v854
    %920 = vmatpush1.bf16.msra.mxu0 %v853
    %921 = vmatprep.subr.bf16.mxu0 %v850
    %922 = vmatpush1.bf16.msra.mxu0 %v849
    %923 = vmatprep.subr.bf16.mxu0 %v846
    %924 = vmatpush1.bf16.msra.mxu0 %v845
    %925 = vmatprep.subr.bf16.mxu0 0
    %926 = vmatpush2.bf16.msra.mxu0 0
    %927 = vmatprep.subr.bf16.mxu0 0
    %928 = vmatpush2.bf16.msra.mxu0 0
    %929 = vmatprep.subr.bf16.mxu0 0
    %930 = vmatpush2.bf16.msra.mxu0 0
    %931 = vmatprep.subr.bf16.mxu0 0
    %932 = vmatpush2.bf16.msra.mxu0 0
    %933 = vmatprep.subr.bf16.mxu0 0
    %934 = vmatpush2.bf16.msra.mxu0 0
    %935 = vmatprep.subr.bf16.mxu0 0
    %936 = vmatpush2.bf16.msra.mxu0 0
    %937 = vmatprep.subr.bf16.mxu0 0
    %938 = vmatpush2.bf16.msra.mxu0 0
    %939 = vmatprep.subr.bf16.mxu0 0
    %940 = vmatpush2.bf16.msra.mxu0 0
    %941 = vmatprep.mubr.bf16.mxu0 0
    %942 = vmatmul.mubr.bf16.gmra.mxu0 %v748
    %v943 = vpop.f32.mrf.mxu0
    %v944 = vadd.f32 0.0, %v943
    %v945 = vpop.f32.mrf.mxu0
    %v946 = vadd.f32 0.0, %v945
    %v947 = vpop.f32.mrf.mxu0
    %v948 = vpop.f32.mrf.mxu0
    %949 = vdwg.mxu0
    %950 = vmatprep.subr.bf16.mxu0 %v876
    %951 = vmatpush1.bf16.msra.mxu0 %v875
    %952 = vmatprep.subr.bf16.mxu0 %v872
    %953 = vmatpush1.bf16.msra.mxu0 %v871
    %954 = vmatprep.subr.bf16.mxu0 %v868
    %955 = vmatpush1.bf16.msra.mxu0 %v867
    %956 = vmatprep.subr.bf16.mxu0 %v864
    %957 = vmatpush1.bf16.msra.mxu0 %v863
    %958 = vmatprep.subr.bf16.mxu0 %v860
    %959 = vmatpush1.bf16.msra.mxu0 %v859
    %960 = vmatprep.subr.bf16.mxu0 %v856
    %961 = vmatpush1.bf16.msra.mxu0 %v855
    %962 = vmatprep.subr.bf16.mxu0 %v852
    %963 = vmatpush1.bf16.msra.mxu0 %v851
    %964 = vmatprep.subr.bf16.mxu0 %v848
    %965 = vmatpush1.bf16.msra.mxu0 %v847
    %966 = vmatprep.subr.bf16.mxu0 0
    %967 = vmatpush2.bf16.msra.mxu0 0
    %968 = vmatprep.subr.bf16.mxu0 0
    %969 = vmatpush2.bf16.msra.mxu0 0
    %970 = vmatprep.subr.bf16.mxu0 0
    %971 = vmatpush2.bf16.msra.mxu0 0
    %972 = vmatprep.subr.bf16.mxu0 0
    %973 = vmatpush2.bf16.msra.mxu0 0
    %974 = vmatprep.subr.bf16.mxu0 0
    %975 = vmatpush2.bf16.msra.mxu0 0
    %976 = vmatprep.subr.bf16.mxu0 0
    %977 = vmatpush2.bf16.msra.mxu0 0
    %978 = vmatprep.subr.bf16.mxu0 0
    %979 = vmatpush2.bf16.msra.mxu0 0
    %980 = vmatprep.subr.bf16.mxu0 0
    %981 = vmatpush2.bf16.msra.mxu0 0
    %982 = vmatprep.mubr.bf16.mxu0 0
    %983 = vmatmul.mubr.bf16.gmra.mxu0 %v748
    %v984 = vpop.f32.mrf.mxu0
    %v985 = vadd.f32 0.0, %v984
    %v986 = vpop.f32.mrf.mxu0
    %v987 = vadd.f32 0.0, %v986
    %v988 = vpop.f32.mrf.mxu0
    %v989 = vpop.f32.mrf.mxu0
    %990 = vdwg.mxu0
    %v991 = vadd.f32 %v603, %v944
    %v992 = vadd.f32 %v605, %v946
    %v993 = vadd.f32 %v676, %v985
    %v994 = vadd.f32 %v678, %v987
    %v995 = vxor.u32 %v991, 2147483648
    %v996 = vmul.f32 %v995, 1.442695
    %v997 = vpow.pop %v996
    %v998 = vadd.f32 %v997, 1.0
    %v999 = vrcp.pop %v998
    %v1000 = vmul.f32 1.0, %v999
    %v1001 = vxor.u32 %v992, 2147483648
    %v1002 = vmul.f32 %v1001, 1.442695
    %v1003 = vpow.pop %v1002
    %v1004 = vadd.f32 %v1003, 1.0
    %v1005 = vrcp.pop %v1004
    %v1006 = vmul.f32 1.0, %v1005
    %v1007 = vtanh.pop %v993
    %v1008 = vxor.u32 %v994, 2147483648
    %v1009 = vmul.f32 %v1008, 1.442695
    %v1010 = vpow.pop %v1009
    %v1011 = vadd.f32 %v1010, 1.0
    %v1012 = vrcp.pop %v1011
    %v1013 = vmul.f32 1.0, %v1012
    %v1014 = vmul.f32 %v1006, %v747
    %v1015 = vmul.f32 %v1000, %v1007
    %v1016 = vadd.f32 %v1014, %v1015
    %v1017 = vtanh.pop %v1016
    %v1018 = vmul.f32 %v1013, %v1017
    %v1019 = vpack.c.bf16 %v1018, %v1018
    %1020 = vmatprep.subr.bf16.mxu0 %v874
    %1021 = vmatpush1.bf16.msra.mxu0 %v873
    %1022 = vmatprep.subr.bf16.mxu0 %v870
    %1023 = vmatpush1.bf16.msra.mxu0 %v869
    %1024 = vmatprep.subr.bf16.mxu0 %v866
    %1025 = vmatpush1.bf16.msra.mxu0 %v865
    %1026 = vmatprep.subr.bf16.mxu0 %v862
    %1027 = vmatpush1.bf16.msra.mxu0 %v861
    %1028 = vmatprep.subr.bf16.mxu0 %v858
    %1029 = vmatpush1.bf16.msra.mxu0 %v857
    %1030 = vmatprep.subr.bf16.mxu0 %v854
    %1031 = vmatpush1.bf16.msra.mxu0 %v853
    %1032 = vmatprep.subr.bf16.mxu0 %v850
    %1033 = vmatpush1.bf16.msra.mxu0 %v849
    %1034 = vmatprep.subr.bf16.mxu0 %v846
    %1035 = vmatpush1.bf16.msra.mxu0 %v845
    %1036 = vmatprep.subr.bf16.mxu0 0
    %1037 = vmatpush2.bf16.msra.mxu0 0
    %1038 = vmatprep.subr.bf16.mxu0 0
    %1039 = vmatpush2.bf16.msra.mxu0 0
    %1040 = vmatprep.subr.bf16.mxu0 0
    %1041 = vmatpush2.bf16.msra.mxu0 0
    %1042 = vmatprep.subr.bf16.mxu0 0
    %1043 = vmatpush2.bf16.msra.mxu0 0
    %1044 = vmatprep.subr.bf16.mxu0 0
    %1045 = vmatpush2.bf16.msra.mxu0 0
    %1046 = vmatprep.subr.bf16.mxu0 0
    %1047 = vmatpush2.bf16.msra.mxu0 0
    %1048 = vmatprep.subr.bf16.mxu0 0
    %1049 = vmatpush2.bf16.msra.mxu0 0
    %1050 = vmatprep.subr.bf16.mxu0 0
    %1051 = vmatpush2.bf16.msra.mxu0 0
    %1052 = vmatprep.mubr.bf16.mxu0 0
    %1053 = vmatmul.mubr.bf16.gmra.mxu0 %v1019
    %v1054 = vpop.f32.mrf.mxu0
    %v1055 = vadd.f32 0.0, %v1054
    %v1056 = vpop.f32.mrf.mxu0
    %v1057 = vadd.f32 0.0, %v1056
    %v1058 = vpop.f32.mrf.mxu0
    %v1059 = vpop.f32.mrf.mxu0
    %1060 = vdwg.mxu0
    %1061 = vmatprep.subr.bf16.mxu0 %v876
    %1062 = vmatpush1.bf16.msra.mxu0 %v875
    %1063 = vmatprep.subr.bf16.mxu0 %v872
    %1064 = vmatpush1.bf16.msra.mxu0 %v871
    %1065 = vmatprep.subr.bf16.mxu0 %v868
    %1066 = vmatpush1.bf16.msra.mxu0 %v867
    %1067 = vmatprep.subr.bf16.mxu0 %v864
    %1068 = vmatpush1.bf16.msra.mxu0 %v863
    %1069 = vmatprep.subr.bf16.mxu0 %v860
    %1070 = vmatpush1.bf16.msra.mxu0 %v859
    %1071 = vmatprep.subr.bf16.mxu0 %v856
    %1072 = vmatpush1.bf16.msra.mxu0 %v855
    %1073 = vmatprep.subr.bf16.mxu0 %v852
    %1074 = vmatpush1.bf16.msra.mxu0 %v851
    %1075 = vmatprep.subr.bf16.mxu0 %v848
    %1076 = vmatpush1.bf16.msra.mxu0 %v847
    %1077 = vmatprep.subr.bf16.mxu0 0
    %1078 = vmatpush2.bf16.msra.mxu0 0
    %1079 = vmatprep.subr.bf16.mxu0 0
    %1080 = vmatpush2.bf16.msra.mxu0 0
    %1081 = vmatprep.subr.bf16.mxu0 0
    %1082 = vmatpush2.bf16.msra.mxu0 0
    %1083 = vmatprep.subr.bf16.mxu0 0
    %1084 = vmatpush2.bf16.msra.mxu0 0
    %1085 = vmatprep.subr.bf16.mxu0 0
    %1086 = vmatpush2.bf16.msra.mxu0 0
    %1087 = vmatprep.subr.bf16.mxu0 0
    %1088 = vmatpush2.bf16.msra.mxu0 0
    %1089 = vmatprep.subr.bf16.mxu0 0
    %1090 = vmatpush2.bf16.msra.mxu0 0
    %1091 = vmatprep.subr.bf16.mxu0 0
    %1092 = vmatpush2.bf16.msra.mxu0 0
    %1093 = vmatprep.mubr.bf16.mxu0 0
    %1094 = vmatmul.mubr.bf16.gmra.mxu0 %v1019
    %v1095 = vpop.f32.mrf.mxu0
    %v1096 = vadd.f32 0.0, %v1095
    %v1097 = vpop.f32.mrf.mxu0
    %v1098 = vadd.f32 0.0, %v1097
    %v1099 = vpop.f32.mrf.mxu0
    %v1100 = vpop.f32.mrf.mxu0
    %1101 = vdwg.mxu0
    %v1102 = vadd.f32 %v607, %v1055
    %v1103 = vadd.f32 %v609, %v1057
    %v1104 = vadd.f32 %v680, %v1096
    %v1105 = vadd.f32 %v682, %v1098
    %v1106 = vxor.u32 %v1102, 2147483648
    %v1107 = vmul.f32 %v1106, 1.442695
    %v1108 = vpow.pop %v1107
    %v1109 = vadd.f32 %v1108, 1.0
    %v1110 = vrcp.pop %v1109
    %v1111 = vmul.f32 1.0, %v1110
    %v1112 = vxor.u32 %v1103, 2147483648
    %v1113 = vmul.f32 %v1112, 1.442695
    %v1114 = vpow.pop %v1113
    %v1115 = vadd.f32 %v1114, 1.0
    %v1116 = vrcp.pop %v1115
    %v1117 = vmul.f32 1.0, %v1116
    %v1118 = vtanh.pop %v1104
    %v1119 = vxor.u32 %v1105, 2147483648
    %v1120 = vmul.f32 %v1119, 1.442695
    %v1121 = vpow.pop %v1120
    %v1122 = vadd.f32 %v1121, 1.0
    %v1123 = vrcp.pop %v1122
    %v1124 = vmul.f32 1.0, %v1123
    %v1125 = vmul.f32 %v1117, %v1016
    %v1126 = vmul.f32 %v1111, %v1118
    %v1127 = vadd.f32 %v1125, %v1126
    %v1128 = vtanh.pop %v1127
    %v1129 = vmul.f32 %v1124, %v1128
    %v1130 = vpack.c.bf16 %v1129, %v1129
    %1131 = vmatprep.subr.bf16.mxu0 %v874
    %1132 = vmatpush1.bf16.msra.mxu0 %v873
    %1133 = vmatprep.subr.bf16.mxu0 %v870
    %1134 = vmatpush1.bf16.msra.mxu0 %v869
    %1135 = vmatprep.subr.bf16.mxu0 %v866
    %1136 = vmatpush1.bf16.msra.mxu0 %v865
    %1137 = vmatprep.subr.bf16.mxu0 %v862
    %1138 = vmatpush1.bf16.msra.mxu0 %v861
    %1139 = vmatprep.subr.bf16.mxu0 %v858
    %1140 = vmatpush1.bf16.msra.mxu0 %v857
    %1141 = vmatprep.subr.bf16.mxu0 %v854
    %1142 = vmatpush1.bf16.msra.mxu0 %v853
    %1143 = vmatprep.subr.bf16.mxu0 %v850
    %1144 = vmatpush1.bf16.msra.mxu0 %v849
    %1145 = vmatprep.subr.bf16.mxu0 %v846
    %1146 = vmatpush1.bf16.msra.mxu0 %v845
    %1147 = vmatprep.subr.bf16.mxu0 0
    %1148 = vmatpush2.bf16.msra.mxu0 0
    %1149 = vmatprep.subr.bf16.mxu0 0
    %1150 = vmatpush2.bf16.msra.mxu0 0
    %1151 = vmatprep.subr.bf16.mxu0 0
    %1152 = vmatpush2.bf16.msra.mxu0 0
    %1153 = vmatprep.subr.bf16.mxu0 0
    %1154 = vmatpush2.bf16.msra.mxu0 0
    %1155 = vmatprep.subr.bf16.mxu0 0
    %1156 = vmatpush2.bf16.msra.mxu0 0
    %1157 = vmatprep.subr.bf16.mxu0 0
    %1158 = vmatpush2.bf16.msra.mxu0 0
    %1159 = vmatprep.subr.bf16.mxu0 0
    %1160 = vmatpush2.bf16.msra.mxu0 0
    %1161 = vmatprep.subr.bf16.mxu0 0
    %1162 = vmatpush2.bf16.msra.mxu0 0
    %1163 = vmatprep.mubr.bf16.mxu0 0
    %1164 = vmatmul.mubr.bf16.gmra.mxu0 %v1130
    %v1165 = vpop.f32.mrf.mxu0
    %v1166 = vadd.f32 0.0, %v1165
    %v1167 = vpop.f32.mrf.mxu0
    %v1168 = vadd.f32 0.0, %v1167
    %v1169 = vpop.f32.mrf.mxu0
    %v1170 = vpop.f32.mrf.mxu0
    %1171 = vdwg.mxu0
    %1172 = vmatprep.subr.bf16.mxu0 %v876
    %1173 = vmatpush1.bf16.msra.mxu0 %v875
    %1174 = vmatprep.subr.bf16.mxu0 %v872
    %1175 = vmatpush1.bf16.msra.mxu0 %v871
    %1176 = vmatprep.subr.bf16.mxu0 %v868
    %1177 = vmatpush1.bf16.msra.mxu0 %v867
    %1178 = vmatprep.subr.bf16.mxu0 %v864
    %1179 = vmatpush1.bf16.msra.mxu0 %v863
    %1180 = vmatprep.subr.bf16.mxu0 %v860
    %1181 = vmatpush1.bf16.msra.mxu0 %v859
    %1182 = vmatprep.subr.bf16.mxu0 %v856
    %1183 = vmatpush1.bf16.msra.mxu0 %v855
    %1184 = vmatprep.subr.bf16.mxu0 %v852
    %1185 = vmatpush1.bf16.msra.mxu0 %v851
    %1186 = vmatprep.subr.bf16.mxu0 %v848
    %1187 = vmatpush1.bf16.msra.mxu0 %v847
    %1188 = vmatprep.subr.bf16.mxu0 0
    %1189 = vmatpush2.bf16.msra.mxu0 0
    %1190 = vmatprep.subr.bf16.mxu0 0
    %1191 = vmatpush2.bf16.msra.mxu0 0
    %1192 = vmatprep.subr.bf16.mxu0 0
    %1193 = vmatpush2.bf16.msra.mxu0 0
    %1194 = vmatprep.subr.bf16.mxu0 0
    %1195 = vmatpush2.bf16.msra.mxu0 0
    %1196 = vmatprep.subr.bf16.mxu0 0
    %1197 = vmatpush2.bf16.msra.mxu0 0
    %1198 = vmatprep.subr.bf16.mxu0 0
    %1199 = vmatpush2.bf16.msra.mxu0 0
    %1200 = vmatprep.subr.bf16.mxu0 0
    %1201 = vmatpush2.bf16.msra.mxu0 0
    %1202 = vmatprep.subr.bf16.mxu0 0
    %1203 = vmatpush2.bf16.msra.mxu0 0
    %1204 = vmatprep.mubr.bf16.mxu0 0
    %1205 = vmatmul.mubr.bf16.gmra.mxu0 %v1130
    %v1206 = vpop.f32.mrf.mxu0
    %v1207 = vadd.f32 0.0, %v1206
    %v1208 = vpop.f32.mrf.mxu0
    %v1209 = vadd.f32 0.0, %v1208
    %v1210 = vpop.f32.mrf.mxu0
    %v1211 = vpop.f32.mrf.mxu0
    %1212 = vdwg.mxu0
    %v1213 = vadd.f32 %v613, %v1166
    %v1214 = vadd.f32 %v615, %v1168
    %v1215 = vadd.f32 %v686, %v1207
    %v1216 = vadd.f32 %v688, %v1209
    %v1217 = vxor.u32 %v1213, 2147483648
    %v1218 = vmul.f32 %v1217, 1.442695
    %v1219 = vpow.pop %v1218
    %v1220 = vadd.f32 %v1219, 1.0
    %v1221 = vrcp.pop %v1220
    %v1222 = vmul.f32 1.0, %v1221
    %v1223 = vxor.u32 %v1214, 2147483648
    %v1224 = vmul.f32 %v1223, 1.442695
    %v1225 = vpow.pop %v1224
    %v1226 = vadd.f32 %v1225, 1.0
    %v1227 = vrcp.pop %v1226
    %v1228 = vmul.f32 1.0, %v1227
    %v1229 = vtanh.pop %v1215
    %v1230 = vxor.u32 %v1216, 2147483648
    %v1231 = vmul.f32 %v1230, 1.442695
    %v1232 = vpow.pop %v1231
    %v1233 = vadd.f32 %v1232, 1.0
    %v1234 = vrcp.pop %v1233
    %v1235 = vmul.f32 1.0, %v1234
    %v1236 = vmul.f32 %v1228, %v1127
    %v1237 = vmul.f32 %v1222, %v1229
    %v1238 = vadd.f32 %v1236, %v1237
    %v1239 = vtanh.pop %v1238
    %v1240 = vmul.f32 %v1235, %v1239
    %v1241 = vpack.c.bf16 %v1240, %v1240
    %1242 = vmatprep.subr.bf16.mxu0 %v874
    %1243 = vmatpush1.bf16.msra.mxu0 %v873
    %1244 = vmatprep.subr.bf16.mxu0 %v870
    %1245 = vmatpush1.bf16.msra.mxu0 %v869
    %1246 = vmatprep.subr.bf16.mxu0 %v866
    %1247 = vmatpush1.bf16.msra.mxu0 %v865
    %1248 = vmatprep.subr.bf16.mxu0 %v862
    %1249 = vmatpush1.bf16.msra.mxu0 %v861
    %1250 = vmatprep.subr.bf16.mxu0 %v858
    %1251 = vmatpush1.bf16.msra.mxu0 %v857
    %1252 = vmatprep.subr.bf16.mxu0 %v854
    %1253 = vmatpush1.bf16.msra.mxu0 %v853
    %1254 = vmatprep.subr.bf16.mxu0 %v850
    %1255 = vmatpush1.bf16.msra.mxu0 %v849
    %1256 = vmatprep.subr.bf16.mxu0 %v846
    %1257 = vmatpush1.bf16.msra.mxu0 %v845
    %1258 = vmatprep.subr.bf16.mxu0 0
    %1259 = vmatpush2.bf16.msra.mxu0 0
    %1260 = vmatprep.subr.bf16.mxu0 0
    %1261 = vmatpush2.bf16.msra.mxu0 0
    %1262 = vmatprep.subr.bf16.mxu0 0
    %1263 = vmatpush2.bf16.msra.mxu0 0
    %1264 = vmatprep.subr.bf16.mxu0 0
    %1265 = vmatpush2.bf16.msra.mxu0 0
    %1266 = vmatprep.subr.bf16.mxu0 0
    %1267 = vmatpush2.bf16.msra.mxu0 0
    %1268 = vmatprep.subr.bf16.mxu0 0
    %1269 = vmatpush2.bf16.msra.mxu0 0
    %1270 = vmatprep.subr.bf16.mxu0 0
    %1271 = vmatpush2.bf16.msra.mxu0 0
    %1272 = vmatprep.subr.bf16.mxu0 0
    %1273 = vmatpush2.bf16.msra.mxu0 0
    %1274 = vmatprep.mubr.bf16.mxu0 0
    %1275 = vmatmul.mubr.bf16.gmra.mxu0 %v1241
    %v1276 = vpop.f32.mrf.mxu0
    %v1277 = vadd.f32 0.0, %v1276
    %v1278 = vpop.f32.mrf.mxu0
    %v1279 = vadd.f32 0.0, %v1278
    %v1280 = vpop.f32.mrf.mxu0
    %v1281 = vpop.f32.mrf.mxu0
    %1282 = vdwg.mxu0
    %1283 = vmatprep.subr.bf16.mxu0 %v876
    %1284 = vmatpush1.bf16.msra.mxu0 %v875
    %1285 = vmatprep.subr.bf16.mxu0 %v872
    %1286 = vmatpush1.bf16.msra.mxu0 %v871
    %1287 = vmatprep.subr.bf16.mxu0 %v868
    %1288 = vmatpush1.bf16.msra.mxu0 %v867
    %1289 = vmatprep.subr.bf16.mxu0 %v864
    %1290 = vmatpush1.bf16.msra.mxu0 %v863
    %1291 = vmatprep.subr.bf16.mxu0 %v860
    %1292 = vmatpush1.bf16.msra.mxu0 %v859
    %1293 = vmatprep.subr.bf16.mxu0 %v856
    %1294 = vmatpush1.bf16.msra.mxu0 %v855
    %1295 = vmatprep.subr.bf16.mxu0 %v852
    %1296 = vmatpush1.bf16.msra.mxu0 %v851
    %1297 = vmatprep.subr.bf16.mxu0 %v848
    %1298 = vmatpush1.bf16.msra.mxu0 %v847
    %1299 = vmatprep.subr.bf16.mxu0 0
    %1300 = vmatpush2.bf16.msra.mxu0 0
    %1301 = vmatprep.subr.bf16.mxu0 0
    %1302 = vmatpush2.bf16.msra.mxu0 0
    %1303 = vmatprep.subr.bf16.mxu0 0
    %1304 = vmatpush2.bf16.msra.mxu0 0
    %1305 = vmatprep.subr.bf16.mxu0 0
    %1306 = vmatpush2.bf16.msra.mxu0 0
    %1307 = vmatprep.subr.bf16.mxu0 0
    %1308 = vmatpush2.bf16.msra.mxu0 0
    %1309 = vmatprep.subr.bf16.mxu0 0
    %1310 = vmatpush2.bf16.msra.mxu0 0
    %1311 = vmatprep.subr.bf16.mxu0 0
    %1312 = vmatpush2.bf16.msra.mxu0 0
    %1313 = vmatprep.subr.bf16.mxu0 0
    %1314 = vmatpush2.bf16.msra.mxu0 0
    %1315 = vmatprep.mubr.bf16.mxu0 0
    %1316 = vmatmul.mubr.bf16.gmra.mxu0 %v1241
    %v1317 = vpop.f32.mrf.mxu0
    %v1318 = vadd.f32 0.0, %v1317
    %v1319 = vpop.f32.mrf.mxu0
    %v1320 = vadd.f32 0.0, %v1319
    %v1321 = vpop.f32.mrf.mxu0
    %v1322 = vpop.f32.mrf.mxu0
    %1323 = vdwg.mxu0
    %v1324 = vadd.f32 %v617, %v1277
    %v1325 = vadd.f32 %v619, %v1279
    %v1326 = vadd.f32 %v690, %v1318
    %v1327 = vadd.f32 %v692, %v1320
    %v1328 = vxor.u32 %v1324, 2147483648
    %v1329 = vmul.f32 %v1328, 1.442695
    %v1330 = vpow.pop %v1329
    %v1331 = vadd.f32 %v1330, 1.0
    %v1332 = vrcp.pop %v1331
    %v1333 = vmul.f32 1.0, %v1332
    %v1334 = vxor.u32 %v1325, 2147483648
    %v1335 = vmul.f32 %v1334, 1.442695
    %v1336 = vpow.pop %v1335
    %v1337 = vadd.f32 %v1336, 1.0
    %v1338 = vrcp.pop %v1337
    %v1339 = vmul.f32 1.0, %v1338
    %v1340 = vtanh.pop %v1326
    %v1341 = vxor.u32 %v1327, 2147483648
    %v1342 = vmul.f32 %v1341, 1.442695
    %v1343 = vpow.pop %v1342
    %v1344 = vadd.f32 %v1343, 1.0
    %v1345 = vrcp.pop %v1344
    %v1346 = vmul.f32 1.0, %v1345
    %v1347 = vmul.f32 %v1339, %v1238
    %v1348 = vmul.f32 %v1333, %v1340
    %v1349 = vadd.f32 %v1347, %v1348
    %v1350 = vtanh.pop %v1349
    %v1351 = vmul.f32 %v1346, %v1350
    %v1352 = vpack.c.bf16 %v1351, %v1351
    %1353 = vmatprep.subr.bf16.mxu0 %v874
    %1354 = vmatpush1.bf16.msra.mxu0 %v873
    %1355 = vmatprep.subr.bf16.mxu0 %v870
    %1356 = vmatpush1.bf16.msra.mxu0 %v869
    %1357 = vmatprep.subr.bf16.mxu0 %v866
    %1358 = vmatpush1.bf16.msra.mxu0 %v865
    %1359 = vmatprep.subr.bf16.mxu0 %v862
    %1360 = vmatpush1.bf16.msra.mxu0 %v861
    %1361 = vmatprep.subr.bf16.mxu0 %v858
    %1362 = vmatpush1.bf16.msra.mxu0 %v857
    %1363 = vmatprep.subr.bf16.mxu0 %v854
    %1364 = vmatpush1.bf16.msra.mxu0 %v853
    %1365 = vmatprep.subr.bf16.mxu0 %v850
    %1366 = vmatpush1.bf16.msra.mxu0 %v849
    %1367 = vmatprep.subr.bf16.mxu0 %v846
    %1368 = vmatpush1.bf16.msra.mxu0 %v845
    %1369 = vmatprep.subr.bf16.mxu0 0
    %1370 = vmatpush2.bf16.msra.mxu0 0
    %1371 = vmatprep.subr.bf16.mxu0 0
    %1372 = vmatpush2.bf16.msra.mxu0 0
    %1373 = vmatprep.subr.bf16.mxu0 0
    %1374 = vmatpush2.bf16.msra.mxu0 0
    %1375 = vmatprep.subr.bf16.mxu0 0
    %1376 = vmatpush2.bf16.msra.mxu0 0
    %1377 = vmatprep.subr.bf16.mxu0 0
    %1378 = vmatpush2.bf16.msra.mxu0 0
    %1379 = vmatprep.subr.bf16.mxu0 0
    %1380 = vmatpush2.bf16.msra.mxu0 0
    %1381 = vmatprep.subr.bf16.mxu0 0
    %1382 = vmatpush2.bf16.msra.mxu0 0
    %1383 = vmatprep.subr.bf16.mxu0 0
    %1384 = vmatpush2.bf16.msra.mxu0 0
    %1385 = vmatprep.mubr.bf16.mxu0 0
    %1386 = vmatmul.mubr.bf16.gmra.mxu0 %v1352
    %v1387 = vpop.f32.mrf.mxu0
    %v1388 = vadd.f32 0.0, %v1387
    %v1389 = vpop.f32.mrf.mxu0
    %v1390 = vadd.f32 0.0, %v1389
    %v1391 = vpop.f32.mrf.mxu0
    %v1392 = vpop.f32.mrf.mxu0
    %1393 = vdwg.mxu0
    %1394 = vmatprep.subr.bf16.mxu0 %v876
    %1395 = vmatpush1.bf16.msra.mxu0 %v875
    %1396 = vmatprep.subr.bf16.mxu0 %v872
    %1397 = vmatpush1.bf16.msra.mxu0 %v871
    %1398 = vmatprep.subr.bf16.mxu0 %v868
    %1399 = vmatpush1.bf16.msra.mxu0 %v867
    %1400 = vmatprep.subr.bf16.mxu0 %v864
    %1401 = vmatpush1.bf16.msra.mxu0 %v863
    %1402 = vmatprep.subr.bf16.mxu0 %v860
    %1403 = vmatpush1.bf16.msra.mxu0 %v859
    %1404 = vmatprep.subr.bf16.mxu0 %v856
    %1405 = vmatpush1.bf16.msra.mxu0 %v855
    %1406 = vmatprep.subr.bf16.mxu0 %v852
    %1407 = vmatpush1.bf16.msra.mxu0 %v851
    %1408 = vmatprep.subr.bf16.mxu0 %v848
    %1409 = vmatpush1.bf16.msra.mxu0 %v847
    %1410 = vmatprep.subr.bf16.mxu0 0
    %1411 = vmatpush2.bf16.msra.mxu0 0
    %1412 = vmatprep.subr.bf16.mxu0 0
    %1413 = vmatpush2.bf16.msra.mxu0 0
    %1414 = vmatprep.subr.bf16.mxu0 0
    %1415 = vmatpush2.bf16.msra.mxu0 0
    %1416 = vmatprep.subr.bf16.mxu0 0
    %1417 = vmatpush2.bf16.msra.mxu0 0
    %1418 = vmatprep.subr.bf16.mxu0 0
    %1419 = vmatpush2.bf16.msra.mxu0 0
    %1420 = vmatprep.subr.bf16.mxu0 0
    %1421 = vmatpush2.bf16.msra.mxu0 0
    %1422 = vmatprep.subr.bf16.mxu0 0
    %1423 = vmatpush2.bf16.msra.mxu0 0
    %1424 = vmatprep.subr.bf16.mxu0 0
    %1425 = vmatpush2.bf16.msra.mxu0 0
    %1426 = vmatprep.mubr.bf16.mxu0 0
    %1427 = vmatmul.mubr.bf16.gmra.mxu0 %v1352
    %v1428 = vpop.f32.mrf.mxu0
    %v1429 = vadd.f32 0.0, %v1428
    %v1430 = vpop.f32.mrf.mxu0
    %v1431 = vadd.f32 0.0, %v1430
    %v1432 = vpop.f32.mrf.mxu0
    %v1433 = vpop.f32.mrf.mxu0
    %1434 = vdwg.mxu0
    %v1435 = vadd.f32 %v623, %v1388
    %v1436 = vadd.f32 %v625, %v1390
    %v1437 = vadd.f32 %v696, %v1429
    %v1438 = vadd.f32 %v698, %v1431
    %v1439 = vxor.u32 %v1435, 2147483648
    %v1440 = vmul.f32 %v1439, 1.442695
    %v1441 = vpow.pop %v1440
    %v1442 = vadd.f32 %v1441, 1.0
    %v1443 = vrcp.pop %v1442
    %v1444 = vmul.f32 1.0, %v1443
    %v1445 = vxor.u32 %v1436, 2147483648
    %v1446 = vmul.f32 %v1445, 1.442695
    %v1447 = vpow.pop %v1446
    %v1448 = vadd.f32 %v1447, 1.0
    %v1449 = vrcp.pop %v1448
    %v1450 = vmul.f32 1.0, %v1449
    %v1451 = vtanh.pop %v1437
    %v1452 = vxor.u32 %v1438, 2147483648
    %v1453 = vmul.f32 %v1452, 1.442695
    %v1454 = vpow.pop %v1453
    %v1455 = vadd.f32 %v1454, 1.0
    %v1456 = vrcp.pop %v1455
    %v1457 = vmul.f32 1.0, %v1456
    %v1458 = vmul.f32 %v1450, %v1349
    %v1459 = vmul.f32 %v1444, %v1451
    %v1460 = vadd.f32 %v1458, %v1459
    %v1461 = vtanh.pop %v1460
    %v1462 = vmul.f32 %v1457, %v1461
    %v1463 = vpack.c.bf16 %v1462, %v1462
    %1464 = vmatprep.subr.bf16.mxu0 %v874
    %1465 = vmatpush1.bf16.msra.mxu0 %v873
    %1466 = vmatprep.subr.bf16.mxu0 %v870
    %1467 = vmatpush1.bf16.msra.mxu0 %v869
    %1468 = vmatprep.subr.bf16.mxu0 %v866
    %1469 = vmatpush1.bf16.msra.mxu0 %v865
    %1470 = vmatprep.subr.bf16.mxu0 %v862
    %1471 = vmatpush1.bf16.msra.mxu0 %v861
    %1472 = vmatprep.subr.bf16.mxu0 %v858
    %1473 = vmatpush1.bf16.msra.mxu0 %v857
    %1474 = vmatprep.subr.bf16.mxu0 %v854
    %1475 = vmatpush1.bf16.msra.mxu0 %v853
    %1476 = vmatprep.subr.bf16.mxu0 %v850
    %1477 = vmatpush1.bf16.msra.mxu0 %v849
    %1478 = vmatprep.subr.bf16.mxu0 %v846
    %1479 = vmatpush1.bf16.msra.mxu0 %v845
    %1480 = vmatprep.subr.bf16.mxu0 0
    %1481 = vmatpush2.bf16.msra.mxu0 0
    %1482 = vmatprep.subr.bf16.mxu0 0
    %1483 = vmatpush2.bf16.msra.mxu0 0
    %1484 = vmatprep.subr.bf16.mxu0 0
    %1485 = vmatpush2.bf16.msra.mxu0 0
    %1486 = vmatprep.subr.bf16.mxu0 0
    %1487 = vmatpush2.bf16.msra.mxu0 0
    %1488 = vmatprep.subr.bf16.mxu0 0
    %1489 = vmatpush2.bf16.msra.mxu0 0
    %1490 = vmatprep.subr.bf16.mxu0 0
    %1491 = vmatpush2.bf16.msra.mxu0 0
    %1492 = vmatprep.subr.bf16.mxu0 0
    %1493 = vmatpush2.bf16.msra.mxu0 0
    %1494 = vmatprep.subr.bf16.mxu0 0
    %1495 = vmatpush2.bf16.msra.mxu0 0
    %1496 = vmatprep.mubr.bf16.mxu0 0
    %1497 = vmatmul.mubr.bf16.gmra.mxu0 %v1463
    %v1498 = vpop.f32.mrf.mxu0
    %v1499 = vadd.f32 0.0, %v1498
    %v1500 = vpop.f32.mrf.mxu0
    %v1501 = vadd.f32 0.0, %v1500
    %v1502 = vpop.f32.mrf.mxu0
    %v1503 = vpop.f32.mrf.mxu0
    %1504 = vdwg.mxu0
    %1505 = vmatprep.subr.bf16.mxu0 %v876
    %1506 = vmatpush1.bf16.msra.mxu0 %v875
    %1507 = vmatprep.subr.bf16.mxu0 %v872
    %1508 = vmatpush1.bf16.msra.mxu0 %v871
    %1509 = vmatprep.subr.bf16.mxu0 %v868
    %1510 = vmatpush1.bf16.msra.mxu0 %v867
    %1511 = vmatprep.subr.bf16.mxu0 %v864
    %1512 = vmatpush1.bf16.msra.mxu0 %v863
    %1513 = vmatprep.subr.bf16.mxu0 %v860
    %1514 = vmatpush1.bf16.msra.mxu0 %v859
    %1515 = vmatprep.subr.bf16.mxu0 %v856
    %1516 = vmatpush1.bf16.msra.mxu0 %v855
    %1517 = vmatprep.subr.bf16.mxu0 %v852
    %1518 = vmatpush1.bf16.msra.mxu0 %v851
    %1519 = vmatprep.subr.bf16.mxu0 %v848
    %1520 = vmatpush1.bf16.msra.mxu0 %v847
    %1521 = vmatprep.subr.bf16.mxu0 0
    %1522 = vmatpush2.bf16.msra.mxu0 0
    %1523 = vmatprep.subr.bf16.mxu0 0
    %1524 = vmatpush2.bf16.msra.mxu0 0
    %1525 = vmatprep.subr.bf16.mxu0 0
    %1526 = vmatpush2.bf16.msra.mxu0 0
    %1527 = vmatprep.subr.bf16.mxu0 0
    %1528 = vmatpush2.bf16.msra.mxu0 0
    %1529 = vmatprep.subr.bf16.mxu0 0
    %1530 = vmatpush2.bf16.msra.mxu0 0
    %1531 = vmatprep.subr.bf16.mxu0 0
    %1532 = vmatpush2.bf16.msra.mxu0 0
    %1533 = vmatprep.subr.bf16.mxu0 0
    %1534 = vmatpush2.bf16.msra.mxu0 0
    %1535 = vmatprep.subr.bf16.mxu0 0
    %1536 = vmatpush2.bf16.msra.mxu0 0
    %1537 = vmatprep.mubr.bf16.mxu0 0
    %1538 = vmatmul.mubr.bf16.gmra.mxu0 %v1463
    %v1539 = vpop.f32.mrf.mxu0
    %v1540 = vadd.f32 0.0, %v1539
    %v1541 = vpop.f32.mrf.mxu0
    %v1542 = vadd.f32 0.0, %v1541
    %v1543 = vpop.f32.mrf.mxu0
    %v1544 = vpop.f32.mrf.mxu0
    %1545 = vdwg.mxu0
    %v1546 = vadd.f32 %v627, %v1499
    %v1547 = vadd.f32 %v629, %v1501
    %v1548 = vadd.f32 %v700, %v1540
    %v1549 = vadd.f32 %v702, %v1542
    %v1550 = vxor.u32 %v1546, 2147483648
    %v1551 = vmul.f32 %v1550, 1.442695
    %v1552 = vpow.pop %v1551
    %v1553 = vadd.f32 %v1552, 1.0
    %v1554 = vrcp.pop %v1553
    %v1555 = vmul.f32 1.0, %v1554
    %v1556 = vxor.u32 %v1547, 2147483648
    %v1557 = vmul.f32 %v1556, 1.442695
    %v1558 = vpow.pop %v1557
    %v1559 = vadd.f32 %v1558, 1.0
    %v1560 = vrcp.pop %v1559
    %v1561 = vmul.f32 1.0, %v1560
    %v1562 = vtanh.pop %v1548
    %v1563 = vxor.u32 %v1549, 2147483648
    %v1564 = vmul.f32 %v1563, 1.442695
    %v1565 = vpow.pop %v1564
    %v1566 = vadd.f32 %v1565, 1.0
    %v1567 = vrcp.pop %v1566
    %v1568 = vmul.f32 1.0, %v1567
    %v1569 = vmul.f32 %v1561, %v1460
    %v1570 = vmul.f32 %v1555, %v1562
    %v1571 = vadd.f32 %v1569, %v1570
    %v1572 = vtanh.pop %v1571
    %v1573 = vmul.f32 %v1568, %v1572
    %v1574 = vpack.c.bf16 %v1573, %v1573
    %1575 = vmatprep.subr.bf16.mxu0 %v874
    %1576 = vmatpush1.bf16.msra.mxu0 %v873
    %1577 = vmatprep.subr.bf16.mxu0 %v870
    %1578 = vmatpush1.bf16.msra.mxu0 %v869
    %1579 = vmatprep.subr.bf16.mxu0 %v866
    %1580 = vmatpush1.bf16.msra.mxu0 %v865
    %1581 = vmatprep.subr.bf16.mxu0 %v862
    %1582 = vmatpush1.bf16.msra.mxu0 %v861
    %1583 = vmatprep.subr.bf16.mxu0 %v858
    %1584 = vmatpush1.bf16.msra.mxu0 %v857
    %1585 = vmatprep.subr.bf16.mxu0 %v854
    %1586 = vmatpush1.bf16.msra.mxu0 %v853
    %1587 = vmatprep.subr.bf16.mxu0 %v850
    %1588 = vmatpush1.bf16.msra.mxu0 %v849
    %1589 = vmatprep.subr.bf16.mxu0 %v846
    %1590 = vmatpush1.bf16.msra.mxu0 %v845
    %1591 = vmatprep.subr.bf16.mxu0 0
    %1592 = vmatpush2.bf16.msra.mxu0 0
    %1593 = vmatprep.subr.bf16.mxu0 0
    %1594 = vmatpush2.bf16.msra.mxu0 0
    %1595 = vmatprep.subr.bf16.mxu0 0
    %1596 = vmatpush2.bf16.msra.mxu0 0
    %1597 = vmatprep.subr.bf16.mxu0 0
    %1598 = vmatpush2.bf16.msra.mxu0 0
    %1599 = vmatprep.subr.bf16.mxu0 0
    %1600 = vmatpush2.bf16.msra.mxu0 0
    %1601 = vmatprep.subr.bf16.mxu0 0
    %1602 = vmatpush2.bf16.msra.mxu0 0
    %1603 = vmatprep.subr.bf16.mxu0 0
    %1604 = vmatpush2.bf16.msra.mxu0 0
    %1605 = vmatprep.subr.bf16.mxu0 0
    %1606 = vmatpush2.bf16.msra.mxu0 0
    %1607 = vmatprep.mubr.bf16.mxu0 0
    %1608 = vmatmul.mubr.bf16.gmra.mxu0 %v1574
    %v1609 = vpop.f32.mrf.mxu0
    %v1610 = vadd.f32 0.0, %v1609
    %v1611 = vpop.f32.mrf.mxu0
    %v1612 = vadd.f32 0.0, %v1611
    %v1613 = vpop.f32.mrf.mxu0
    %v1614 = vpop.f32.mrf.mxu0
    %1615 = vdwg.mxu0
    %1616 = vmatprep.subr.bf16.mxu0 %v876
    %1617 = vmatpush1.bf16.msra.mxu0 %v875
    %1618 = vmatprep.subr.bf16.mxu0 %v872
    %1619 = vmatpush1.bf16.msra.mxu0 %v871
    %1620 = vmatprep.subr.bf16.mxu0 %v868
    %1621 = vmatpush1.bf16.msra.mxu0 %v867
    %1622 = vmatprep.subr.bf16.mxu0 %v864
    %1623 = vmatpush1.bf16.msra.mxu0 %v863
    %1624 = vmatprep.subr.bf16.mxu0 %v860
    %1625 = vmatpush1.bf16.msra.mxu0 %v859
    %1626 = vmatprep.subr.bf16.mxu0 %v856
    %1627 = vmatpush1.bf16.msra.mxu0 %v855
    %1628 = vmatprep.subr.bf16.mxu0 %v852
    %1629 = vmatpush1.bf16.msra.mxu0 %v851
    %1630 = vmatprep.subr.bf16.mxu0 %v848
    %1631 = vmatpush1.bf16.msra.mxu0 %v847
    %1632 = vmatprep.subr.bf16.mxu0 0
    %1633 = vmatpush2.bf16.msra.mxu0 0
    %1634 = vmatprep.subr.bf16.mxu0 0
    %1635 = vmatpush2.bf16.msra.mxu0 0
    %1636 = vmatprep.subr.bf16.mxu0 0
    %1637 = vmatpush2.bf16.msra.mxu0 0
    %1638 = vmatprep.subr.bf16.mxu0 0
    %1639 = vmatpush2.bf16.msra.mxu0 0
    %1640 = vmatprep.subr.bf16.mxu0 0
    %1641 = vmatpush2.bf16.msra.mxu0 0
    %1642 = vmatprep.subr.bf16.mxu0 0
    %1643 = vmatpush2.bf16.msra.mxu0 0
    %1644 = vmatprep.subr.bf16.mxu0 0
    %1645 = vmatpush2.bf16.msra.mxu0 0
    %1646 = vmatprep.subr.bf16.mxu0 0
    %1647 = vmatpush2.bf16.msra.mxu0 0
    %1648 = vmatprep.mubr.bf16.mxu0 0
    %1649 = vmatmul.mubr.bf16.gmra.mxu0 %v1574
    %v1650 = vpop.f32.mrf.mxu0
    %v1651 = vadd.f32 0.0, %v1650
    %v1652 = vpop.f32.mrf.mxu0
    %v1653 = vadd.f32 0.0, %v1652
    %v1654 = vpop.f32.mrf.mxu0
    %v1655 = vpop.f32.mrf.mxu0
    %1656 = vdwg.mxu0
    %v1657 = vadd.f32 %v633, %v1610
    %v1658 = vadd.f32 %v635, %v1612
    %v1659 = vadd.f32 %v706, %v1651
    %v1660 = vadd.f32 %v708, %v1653
    %v1661 = vxor.u32 %v1657, 2147483648
    %v1662 = vmul.f32 %v1661, 1.442695
    %v1663 = vpow.pop %v1662
    %v1664 = vadd.f32 %v1663, 1.0
    %v1665 = vrcp.pop %v1664
    %v1666 = vmul.f32 1.0, %v1665
    %v1667 = vxor.u32 %v1658, 2147483648
    %v1668 = vmul.f32 %v1667, 1.442695
    %v1669 = vpow.pop %v1668
    %v1670 = vadd.f32 %v1669, 1.0
    %v1671 = vrcp.pop %v1670
    %v1672 = vmul.f32 1.0, %v1671
    %v1673 = vtanh.pop %v1659
    %v1674 = vxor.u32 %v1660, 2147483648
    %v1675 = vmul.f32 %v1674, 1.442695
    %v1676 = vpow.pop %v1675
    %v1677 = vadd.f32 %v1676, 1.0
    %v1678 = vrcp.pop %v1677
    %v1679 = vmul.f32 1.0, %v1678
    %v1680 = vmul.f32 %v1672, %v1571
    %v1681 = vmul.f32 %v1666, %v1673
    %v1682 = vadd.f32 %v1680, %v1681
    %v1683 = vtanh.pop %v1682
    %v1684 = vmul.f32 %v1679, %v1683
    %v1685 = vpack.c.bf16 %v1684, %v1684
    %1686 = vmatprep.subr.bf16.mxu0 %v874
    %1687 = vmatpush1.bf16.msra.mxu0 %v873
    %1688 = vmatprep.subr.bf16.mxu0 %v870
    %1689 = vmatpush1.bf16.msra.mxu0 %v869
    %1690 = vmatprep.subr.bf16.mxu0 %v866
    %1691 = vmatpush1.bf16.msra.mxu0 %v865
    %1692 = vmatprep.subr.bf16.mxu0 %v862
    %1693 = vmatpush1.bf16.msra.mxu0 %v861
    %1694 = vmatprep.subr.bf16.mxu0 %v858
    %1695 = vmatpush1.bf16.msra.mxu0 %v857
    %1696 = vmatprep.subr.bf16.mxu0 %v854
    %1697 = vmatpush1.bf16.msra.mxu0 %v853
    %1698 = vmatprep.subr.bf16.mxu0 %v850
    %1699 = vmatpush1.bf16.msra.mxu0 %v849
    %1700 = vmatprep.subr.bf16.mxu0 %v846
    %1701 = vmatpush1.bf16.msra.mxu0 %v845
    %1702 = vmatprep.subr.bf16.mxu0 0
    %1703 = vmatpush2.bf16.msra.mxu0 0
    %1704 = vmatprep.subr.bf16.mxu0 0
    %1705 = vmatpush2.bf16.msra.mxu0 0
    %1706 = vmatprep.subr.bf16.mxu0 0
    %1707 = vmatpush2.bf16.msra.mxu0 0
    %1708 = vmatprep.subr.bf16.mxu0 0
    %1709 = vmatpush2.bf16.msra.mxu0 0
    %1710 = vmatprep.subr.bf16.mxu0 0
    %1711 = vmatpush2.bf16.msra.mxu0 0
    %1712 = vmatprep.subr.bf16.mxu0 0
    %1713 = vmatpush2.bf16.msra.mxu0 0
    %1714 = vmatprep.subr.bf16.mxu0 0
    %1715 = vmatpush2.bf16.msra.mxu0 0
    %1716 = vmatprep.subr.bf16.mxu0 0
    %1717 = vmatpush2.bf16.msra.mxu0 0
    %1718 = vmatprep.mubr.bf16.mxu0 0
    %1719 = vmatmul.mubr.bf16.gmra.mxu0 %v1685
    %v1720 = vpop.f32.mrf.mxu0
    %v1721 = vadd.f32 0.0, %v1720
    %v1722 = vpop.f32.mrf.mxu0
    %v1723 = vadd.f32 0.0, %v1722
    %v1724 = vpop.f32.mrf.mxu0
    %v1725 = vpop.f32.mrf.mxu0
    %1726 = vdwg.mxu0
    %1727 = vmatprep.subr.bf16.mxu0 %v876
    %1728 = vmatpush1.bf16.msra.mxu0 %v875
    %1729 = vmatprep.subr.bf16.mxu0 %v872
    %1730 = vmatpush1.bf16.msra.mxu0 %v871
    %1731 = vmatprep.subr.bf16.mxu0 %v868
    %1732 = vmatpush1.bf16.msra.mxu0 %v867
    %1733 = vmatprep.subr.bf16.mxu0 %v864
    %1734 = vmatpush1.bf16.msra.mxu0 %v863
    %1735 = vmatprep.subr.bf16.mxu0 %v860
    %1736 = vmatpush1.bf16.msra.mxu0 %v859
    %1737 = vmatprep.subr.bf16.mxu0 %v856
    %1738 = vmatpush1.bf16.msra.mxu0 %v855
    %1739 = vmatprep.subr.bf16.mxu0 %v852
    %1740 = vmatpush1.bf16.msra.mxu0 %v851
    %1741 = vmatprep.subr.bf16.mxu0 %v848
    %1742 = vmatpush1.bf16.msra.mxu0 %v847
    %1743 = vmatprep.subr.bf16.mxu0 0
    %1744 = vmatpush2.bf16.msra.mxu0 0
    %1745 = vmatprep.subr.bf16.mxu0 0
    %1746 = vmatpush2.bf16.msra.mxu0 0
    %1747 = vmatprep.subr.bf16.mxu0 0
    %1748 = vmatpush2.bf16.msra.mxu0 0
    %1749 = vmatprep.subr.bf16.mxu0 0
    %1750 = vmatpush2.bf16.msra.mxu0 0
    %1751 = vmatprep.subr.bf16.mxu0 0
    %1752 = vmatpush2.bf16.msra.mxu0 0
    %1753 = vmatprep.subr.bf16.mxu0 0
    %1754 = vmatpush2.bf16.msra.mxu0 0
    %1755 = vmatprep.subr.bf16.mxu0 0
    %1756 = vmatpush2.bf16.msra.mxu0 0
    %1757 = vmatprep.subr.bf16.mxu0 0
    %1758 = vmatpush2.bf16.msra.mxu0 0
    %1759 = vmatprep.mubr.bf16.mxu0 0
    %1760 = vmatmul.mubr.bf16.gmra.mxu0 %v1685
    %v1761 = vpop.f32.mrf.mxu0
    %v1762 = vadd.f32 0.0, %v1761
    %v1763 = vpop.f32.mrf.mxu0
    %v1764 = vadd.f32 0.0, %v1763
    %v1765 = vpop.f32.mrf.mxu0
    %v1766 = vpop.f32.mrf.mxu0
    %1767 = vdwg.mxu0
    %v1768 = vadd.f32 %v637, %v1721
    %v1769 = vadd.f32 %v639, %v1723
    %v1770 = vadd.f32 %v710, %v1762
    %v1771 = vadd.f32 %v712, %v1764
    %v1772 = vxor.u32 %v1768, 2147483648
    %v1773 = vmul.f32 %v1772, 1.442695
    %v1774 = vpow.pop %v1773
    %v1775 = vadd.f32 %v1774, 1.0
    %v1776 = vrcp.pop %v1775
    %v1777 = vmul.f32 1.0, %v1776
    %v1778 = vxor.u32 %v1769, 2147483648
    %v1779 = vmul.f32 %v1778, 1.442695
    %v1780 = vpow.pop %v1779
    %v1781 = vadd.f32 %v1780, 1.0
    %v1782 = vrcp.pop %v1781
    %v1783 = vmul.f32 1.0, %v1782
    %v1784 = vtanh.pop %v1770
    %v1785 = vxor.u32 %v1771, 2147483648
    %v1786 = vmul.f32 %v1785, 1.442695
    %v1787 = vpow.pop %v1786
    %v1788 = vadd.f32 %v1787, 1.0
    %v1789 = vrcp.pop %v1788
    %v1790 = vmul.f32 1.0, %v1789
    %v1791 = vmul.f32 %v1783, %v1682
    %v1792 = vmul.f32 %v1777, %v1784
    %v1793 = vadd.f32 %v1791, %v1792
    %v1794 = vtanh.pop %v1793
    %v1795 = vmul.f32 %v1790, %v1794
    %v1796 = vpack.c.bf16 %v1795, %v1795
    %1797 = vst [vmem:[#allocation8] sm:$0xff] %v1795
    %1798 = vst [vmem:[#allocation9] sm:$0xff] %v1793
    %v1800 = vrot.slane %v1130, 4
    %v1802 = vrot.slane %v1352, 4
    %v1804 = vrot.slane %v1574, 4
    %v1806 = vrot.slane %v1796, 4
    %vm1807 = vcmask 1043456
    %v1810 = vsel %vm1807, %v1019, %v1800
    %v1814 = vsel %vm1807, %v1241, %v1802
    %v1818 = vsel %vm1807, %v1463, %v1804
    %v1822 = vsel %vm1807, %v1685, %v1806
    %v1824 = vld [vmem:[#allocation7] sm:$0xff]
    %v1825 = vld [vmem:[#allocation7 + $0x8] sm:$0xff]
    %v1826 = vld [vmem:[#allocation7 + $0x10] sm:$0xff]
    %v1827 = vld [vmem:[#allocation7 + $0x18] sm:$0xff]
    %v1828 = vld [vmem:[#allocation7 + $0x20] sm:$0xff]
    %v1829 = vld [vmem:[#allocation7 + $0x28] sm:$0xff]
    %v1830 = vld [vmem:[#allocation7 + $0x30] sm:$0xff]
    %v1831 = vld [vmem:[#allocation7 + $0x38] sm:$0xff]
    %v1832 = vld [vmem:[#allocation7 + $0x40] sm:$0xff]
    %v1833 = vld [vmem:[#allocation7 + $0x48] sm:$0xff]
    %v1834 = vld [vmem:[#allocation7 + $0x50] sm:$0xff]
    %v1835 = vld [vmem:[#allocation7 + $0x58] sm:$0xff]
    %v1836 = vld [vmem:[#allocation7 + $0x60] sm:$0xff]
    %v1837 = vld [vmem:[#allocation7 + $0x68] sm:$0xff]
    %v1838 = vld [vmem:[#allocation7 + $0x70] sm:$0xff]
    %v1839 = vld [vmem:[#allocation7 + $0x78] sm:$0xff]
    %v1840 = vld [vmem:[%s9] sm:$0x3]
    %v1842 = vlaneseq
    %v1843 = vshrl.u32 %v1842, 7
    %v1844 = vsub.s32 0, %v1843
    %v1845 = vrot.slane %v1840, %v1844
    %v1846 = vlaneseq
    %v1847 = vshrl.u32 %v1846, 7
    %v1848 = vsub.s32 1, %v1847
    %v1849 = vrot.slane %v1840, %v1848
    %v1868 = vunpack.c.l.b16 %v1824
    %v1869 = vunpack.c.h.b16 %v1824
    %v1870 = vunpack.c.l.b16 %v1825
    %v1871 = vunpack.c.h.b16 %v1825
    %v1872 = vunpack.c.l.b16 %v1826
    %v1873 = vunpack.c.h.b16 %v1826
    %v1874 = vunpack.c.l.b16 %v1827
    %v1875 = vunpack.c.h.b16 %v1827
    %v1876 = vunpack.c.l.b16 %v1828
    %v1877 = vunpack.c.h.b16 %v1828
    %v1878 = vunpack.c.l.b16 %v1829
    %v1879 = vunpack.c.h.b16 %v1829
    %v1880 = vunpack.c.l.b16 %v1830
    %v1881 = vunpack.c.h.b16 %v1830
    %v1882 = vunpack.c.l.b16 %v1831
    %v1883 = vunpack.c.h.b16 %v1831
    %v1884 = vunpack.c.l.b16 %v1832
    %v1885 = vunpack.c.h.b16 %v1832
    %v1886 = vunpack.c.l.b16 %v1833
    %v1887 = vunpack.c.h.b16 %v1833
    %v1888 = vunpack.c.l.b16 %v1834
    %v1889 = vunpack.c.h.b16 %v1834
    %v1890 = vunpack.c.l.b16 %v1835
    %v1891 = vunpack.c.h.b16 %v1835
    %v1892 = vunpack.c.l.b16 %v1836
    %v1893 = vunpack.c.h.b16 %v1836
    %v1894 = vunpack.c.l.b16 %v1837
    %v1895 = vunpack.c.h.b16 %v1837
    %v1896 = vunpack.c.l.b16 %v1838
    %v1897 = vunpack.c.h.b16 %v1838
    %v1898 = vunpack.c.l.b16 %v1839
    %v1899 = vunpack.c.h.b16 %v1839
    %v1900 = vpack.c.b16 %v1870, %v1868
    %v1901 = vpack.c.b16 %v1871, %v1869
    %v1902 = vpack.c.b16 %v1874, %v1872
    %v1903 = vpack.c.b16 %v1875, %v1873
    %v1904 = vpack.c.b16 %v1878, %v1876
    %v1905 = vpack.c.b16 %v1879, %v1877
    %v1906 = vpack.c.b16 %v1882, %v1880
    %v1907 = vpack.c.b16 %v1883, %v1881
    %v1908 = vpack.c.b16 %v1886, %v1884
    %v1909 = vpack.c.b16 %v1887, %v1885
    %v1910 = vpack.c.b16 %v1890, %v1888
    %v1911 = vpack.c.b16 %v1891, %v1889
    %v1912 = vpack.c.b16 %v1894, %v1892
    %v1913 = vpack.c.b16 %v1895, %v1893
    %v1914 = vpack.c.b16 %v1898, %v1896
    %v1915 = vpack.c.b16 %v1899, %v1897
    %1932 = vmatprep.subr.bf16.mxu0 %v1915
    %1933 = vmatpush1.bf16.msra.mxu0 %v1914
    %1934 = vmatprep.subr.bf16.mxu0 %v1913
    %1935 = vmatpush1.bf16.msra.mxu0 %v1912
    %1936 = vmatprep.subr.bf16.mxu0 %v1911
    %1937 = vmatpush1.bf16.msra.mxu0 %v1910
    %1938 = vmatprep.subr.bf16.mxu0 %v1909
    %1939 = vmatpush1.bf16.msra.mxu0 %v1908
    %1940 = vmatprep.subr.bf16.mxu0 %v1907
    %1941 = vmatpush1.bf16.msra.mxu0 %v1906
    %1942 = vmatprep.subr.bf16.mxu0 %v1905
    %1943 = vmatpush1.bf16.msra.mxu0 %v1904
    %1944 = vmatprep.subr.bf16.mxu0 %v1903
    %1945 = vmatpush1.bf16.msra.mxu0 %v1902
    %1946 = vmatprep.subr.bf16.mxu0 %v1901
    %1947 = vmatpush1.bf16.msra.mxu0 %v1900
    %1948 = vmatprep.subr.bf16.mxu0 0
    %1949 = vmatpush2.bf16.msra.mxu0 0
    %1950 = vmatprep.subr.bf16.mxu0 0
    %1951 = vmatpush2.bf16.msra.mxu0 0
    %1952 = vmatprep.subr.bf16.mxu0 0
    %1953 = vmatpush2.bf16.msra.mxu0 0
    %1954 = vmatprep.subr.bf16.mxu0 0
    %1955 = vmatpush2.bf16.msra.mxu0 0
    %1956 = vmatprep.subr.bf16.mxu0 0
    %1957 = vmatpush2.bf16.msra.mxu0 0
    %1958 = vmatprep.subr.bf16.mxu0 0
    %1959 = vmatpush2.bf16.msra.mxu0 0
    %1960 = vmatprep.subr.bf16.mxu0 0
    %1961 = vmatpush2.bf16.msra.mxu0 0
    %1962 = vmatprep.subr.bf16.mxu0 0
    %1963 = vmatpush2.bf16.msra.mxu0 0
    %1964 = vmatprep.mubr.bf16.mxu0 0
    %1965 = vmatmul.mubr.bf16.gmra.mxu0 %v1810
    %v1966 = vpop.f32.mrf.mxu0
    %v1967 = vadd.f32 %v1845, %v1966
    %v1968 = vpop.f32.mrf.mxu0
    %v1969 = vadd.f32 %v1849, %v1968
    %v1970 = vpop.f32.mrf.mxu0
    %v1971 = vadd.f32 %v1845, %v1970
    %v1972 = vpop.f32.mrf.mxu0
    %v1973 = vadd.f32 %v1849, %v1972
    %1974 = vmatprep.mubr.bf16.mxu0 0
    %1975 = vmatmul.mubr.bf16.gmra.mxu0 %v1814
    %v1976 = vpop.f32.mrf.mxu0
    %v1977 = vadd.f32 %v1845, %v1976
    %v1978 = vpop.f32.mrf.mxu0
    %v1979 = vadd.f32 %v1849, %v1978
    %v1980 = vpop.f32.mrf.mxu0
    %v1981 = vadd.f32 %v1845, %v1980
    %v1982 = vpop.f32.mrf.mxu0
    %v1983 = vadd.f32 %v1849, %v1982
    %1984 = vmatprep.mubr.bf16.mxu0 0
    %1985 = vmatmul.mubr.bf16.gmra.mxu0 %v1818
    %v1986 = vpop.f32.mrf.mxu0
    %v1987 = vadd.f32 %v1845, %v1986
    %v1988 = vpop.f32.mrf.mxu0
    %v1989 = vadd.f32 %v1849, %v1988
    %v1990 = vpop.f32.mrf.mxu0
    %v1991 = vadd.f32 %v1845, %v1990
    %v1992 = vpop.f32.mrf.mxu0
    %v1993 = vadd.f32 %v1849, %v1992
    %1994 = vmatprep.mubr.bf16.mxu0 0
    %1995 = vmatmul.mubr.bf16.gmra.mxu0 %v1822
    %v1996 = vpop.f32.mrf.mxu0
    %v1997 = vadd.f32 %v1845, %v1996
    %v1998 = vpop.f32.mrf.mxu0
    %v1999 = vadd.f32 %v1849, %v1998
    %v2000 = vpop.f32.mrf.mxu0
    %v2001 = vadd.f32 %v1845, %v2000
    %v2002 = vpop.f32.mrf.mxu0
    %v2003 = vadd.f32 %v1849, %v2002
    %2004 = vdwg.mxu0
    %v2005 = vmax.f32 %v1967, %v1969
    %2006 = vmax.xlane.f32.xlu0 %v2005
    %v2007 = vpop.xlane.xlu0 %2006
    %v2008 = vmax.f32 %v1971, %v1973
    %2009 = vmax.xlane.f32.xlu0 %v2008
    %v2010 = vpop.xlane.xlu0 %2009
    %v2011 = vmax.f32 %v1977, %v1979
    %2012 = vmax.xlane.f32.xlu0 %v2011
    %v2013 = vpop.xlane.xlu0 %2012
    %v2014 = vmax.f32 %v1981, %v1983
    %2015 = vmax.xlane.f32.xlu0 %v2014
    %v2016 = vpop.xlane.xlu0 %2015
    %v2017 = vmax.f32 %v1987, %v1989
    %2018 = vmax.xlane.f32.xlu0 %v2017
    %v2019 = vpop.xlane.xlu0 %2018
    %v2020 = vmax.f32 %v1991, %v1993
    %2021 = vmax.xlane.f32.xlu0 %v2020
    %v2022 = vpop.xlane.xlu0 %2021
    %v2023 = vmax.f32 %v1997, %v1999
    %2024 = vmax.xlane.f32.xlu0 %v2023
    %v2025 = vpop.xlane.xlu0 %2024
    %v2026 = vmax.f32 %v2001, %v2003
    %2027 = vmax.xlane.f32.xlu0 %v2026
    %v2028 = vpop.xlane.xlu0 %2027
    %v2029 = vsub.f32 %v1967, %v2007
    %v2030 = vsub.f32 %v1969, %v2007
    %v2031 = vsub.f32 %v1971, %v2010
    %v2032 = vsub.f32 %v1973, %v2010
    %v2033 = vsub.f32 %v1977, %v2013
    %v2034 = vsub.f32 %v1979, %v2013
    %v2035 = vsub.f32 %v1981, %v2016
    %v2036 = vsub.f32 %v1983, %v2016
    %v2037 = vsub.f32 %v1987, %v2019
    %v2038 = vsub.f32 %v1989, %v2019
    %v2039 = vsub.f32 %v1991, %v2022
    %v2040 = vsub.f32 %v1993, %v2022
    %v2041 = vsub.f32 %v1997, %v2025
    %v2042 = vsub.f32 %v1999, %v2025
    %v2043 = vsub.f32 %v2001, %v2028
    %v2044 = vsub.f32 %v2003, %v2028
    %v2045 = vmul.f32 %v2029, 1.442695
    %v2046 = vpow.pop %v2045
    %v2047 = vmul.f32 %v2030, 1.442695
    %v2048 = vpow.pop %v2047
    %v2049 = vmul.f32 %v2031, 1.442695
    %v2050 = vpow.pop %v2049
    %v2051 = vmul.f32 %v2032, 1.442695
    %v2052 = vpow.pop %v2051
    %v2053 = vmul.f32 %v2033, 1.442695
    %v2054 = vpow.pop %v2053
    %v2055 = vmul.f32 %v2034, 1.442695
    %v2056 = vpow.pop %v2055
    %v2057 = vmul.f32 %v2035, 1.442695
    %v2058 = vpow.pop %v2057
    %v2059 = vmul.f32 %v2036, 1.442695
    %v2060 = vpow.pop %v2059
    %v2061 = vmul.f32 %v2037, 1.442695
    %v2062 = vpow.pop %v2061
    %v2063 = vmul.f32 %v2038, 1.442695
    %v2064 = vpow.pop %v2063
    %v2065 = vmul.f32 %v2039, 1.442695
    %v2066 = vpow.pop %v2065
    %v2067 = vmul.f32 %v2040, 1.442695
    %v2068 = vpow.pop %v2067
    %v2069 = vmul.f32 %v2041, 1.442695
    %v2070 = vpow.pop %v2069
    %v2071 = vmul.f32 %v2042, 1.442695
    %v2072 = vpow.pop %v2071
    %v2073 = vmul.f32 %v2043, 1.442695
    %v2074 = vpow.pop %v2073
    %v2075 = vmul.f32 %v2044, 1.442695
    %v2076 = vpow.pop %v2075
    %v2077 = vadd.f32 %v2046, %v2048
    %2078 = vadd.xlane.f32.xlu0 %v2077
    %v2079 = vpop.xlane.xlu0 %2078
    %v2080 = vadd.f32 %v2050, %v2052
    %2081 = vadd.xlane.f32.xlu0 %v2080
    %v2082 = vpop.xlane.xlu0 %2081
    %v2083 = vadd.f32 %v2054, %v2056
    %2084 = vadd.xlane.f32.xlu0 %v2083
    %v2085 = vpop.xlane.xlu0 %2084
    %v2086 = vadd.f32 %v2058, %v2060
    %2087 = vadd.xlane.f32.xlu0 %v2086
    %v2088 = vpop.xlane.xlu0 %2087
    %v2089 = vadd.f32 %v2062, %v2064
    %2090 = vadd.xlane.f32.xlu0 %v2089
    %v2091 = vpop.xlane.xlu0 %2090
    %v2092 = vadd.f32 %v2066, %v2068
    %2093 = vadd.xlane.f32.xlu0 %v2092
    %v2094 = vpop.xlane.xlu0 %2093
    %v2095 = vadd.f32 %v2070, %v2072
    %2096 = vadd.xlane.f32.xlu0 %v2095
    %v2097 = vpop.xlane.xlu0 %2096
    %v2098 = vadd.f32 %v2074, %v2076
    %2099 = vadd.xlane.f32.xlu0 %v2098
    %v2100 = vpop.xlane.xlu0 %2099
    %v2101 = vlog2.pop %v2079
    %v2102 = vmul.f32 %v2101, 0.6931472
    %v2103 = vlog2.pop %v2082
    %v2104 = vmul.f32 %v2103, 0.6931472
    %v2105 = vlog2.pop %v2085
    %v2106 = vmul.f32 %v2105, 0.6931472
    %v2107 = vlog2.pop %v2088
    %v2108 = vmul.f32 %v2107, 0.6931472
    %v2109 = vlog2.pop %v2091
    %v2110 = vmul.f32 %v2109, 0.6931472
    %v2111 = vlog2.pop %v2094
    %v2112 = vmul.f32 %v2111, 0.6931472
    %v2113 = vlog2.pop %v2097
    %v2114 = vmul.f32 %v2113, 0.6931472
    %v2115 = vlog2.pop %v2100
    %v2116 = vmul.f32 %v2115, 0.6931472
    %v2117 = vadd.f32 %v2007, %v2102
    %v2118 = vadd.f32 %v2010, %v2104
    %v2119 = vadd.f32 %v2013, %v2106
    %v2120 = vadd.f32 %v2016, %v2108
    %v2121 = vadd.f32 %v2019, %v2110
    %v2122 = vadd.f32 %v2022, %v2112
    %v2123 = vadd.f32 %v2025, %v2114
    %v2124 = vadd.f32 %v2028, %v2116
    %v2125 = vld [vmem:[%s1] sm:$0xff]
    %v2126 = vld [vmem:[%s1 + $0x8] sm:$0xff]
    %v2127 = vld [vmem:[%s1 + $0x10] sm:$0xff]
    %v2128 = vld [vmem:[%s1 + $0x18] sm:$0xff]
    %v2129 = vld [vmem:[%s1 + $0x20] sm:$0xff]
    %v2130 = vld [vmem:[%s1 + $0x28] sm:$0xff]
    %v2131 = vld [vmem:[%s1 + $0x30] sm:$0xff]
    %v2132 = vld [vmem:[%s1 + $0x38] sm:$0xff]
    %2133 = vset.pattern.permute.xlu0 0
    %2134 = vperm.xlu0 %2133, %v2125
    %v2135 = vpop.permute.xlu0 %2134
    %2136 = vset.pattern.permute.xlu0 0
    %2137 = vperm.xlu0 %2136, %v2126
    %v2138 = vpop.permute.xlu0 %2137
    %2139 = vset.pattern.permute.xlu0 0
    %2140 = vperm.xlu0 %2139, %v2127
    %v2141 = vpop.permute.xlu0 %2140
    %2142 = vset.pattern.permute.xlu0 0
    %2143 = vperm.xlu0 %2142, %v2128
    %v2144 = vpop.permute.xlu0 %2143
    %2145 = vset.pattern.permute.xlu0 0
    %2146 = vperm.xlu0 %2145, %v2129
    %v2147 = vpop.permute.xlu0 %2146
    %2148 = vset.pattern.permute.xlu0 0
    %2149 = vperm.xlu0 %2148, %v2130
    %v2150 = vpop.permute.xlu0 %2149
    %2151 = vset.pattern.permute.xlu0 0
    %2152 = vperm.xlu0 %2151, %v2131
    %v2153 = vpop.permute.xlu0 %2152
    %2154 = vset.pattern.permute.xlu0 0
    %2155 = vperm.xlu0 %2154, %v2132
    %v2156 = vpop.permute.xlu0 %2155
    %vm2157 = vcmp.eq.s32.totalorder %v91, %v2135
    %vm2158 = vcmp.eq.s32.totalorder %v92, %v2135
    %vm2159 = vcmp.eq.s32.totalorder %v91, %v2138
    %vm2160 = vcmp.eq.s32.totalorder %v92, %v2138
    %vm2161 = vcmp.eq.s32.totalorder %v91, %v2141
    %vm2162 = vcmp.eq.s32.totalorder %v92, %v2141
    %vm2163 = vcmp.eq.s32.totalorder %v91, %v2144
    %vm2164 = vcmp.eq.s32.totalorder %v92, %v2144
    %vm2165 = vcmp.eq.s32.totalorder %v91, %v2147
    %vm2166 = vcmp.eq.s32.totalorder %v92, %v2147
    %vm2167 = vcmp.eq.s32.totalorder %v91, %v2150
    %vm2168 = vcmp.eq.s32.totalorder %v92, %v2150
    %vm2169 = vcmp.eq.s32.totalorder %v91, %v2153
    %vm2170 = vcmp.eq.s32.totalorder %v92, %v2153
    %vm2171 = vcmp.eq.s32.totalorder %v91, %v2156
    %vm2172 = vcmp.eq.s32.totalorder %v92, %v2156
    %v2173 = vsel %vm2157, %v1967, 0.0
    %v2174 = vsel %vm2158, %v1969, 0.0
    %v2175 = vsel %vm2159, %v1971, 0.0
    %v2176 = vsel %vm2160, %v1973, 0.0
    %v2177 = vsel %vm2161, %v1977, 0.0
    %v2178 = vsel %vm2162, %v1979, 0.0
    %v2179 = vsel %vm2163, %v1981, 0.0
    %v2180 = vsel %vm2164, %v1983, 0.0
    %v2181 = vsel %vm2165, %v1987, 0.0
    %v2182 = vsel %vm2166, %v1989, 0.0
    %v2183 = vsel %vm2167, %v1991, 0.0
    %v2184 = vsel %vm2168, %v1993, 0.0
    %v2185 = vsel %vm2169, %v1997, 0.0
    %v2186 = vsel %vm2170, %v1999, 0.0
    %v2187 = vsel %vm2171, %v2001, 0.0
    %v2188 = vsel %vm2172, %v2003, 0.0
    %v2189 = vadd.f32 %v2173, %v2174
    %2190 = vadd.xlane.f32.xlu0 %v2189
    %v2191 = vpop.xlane.xlu0 %2190
    %v2192 = vadd.f32 %v2175, %v2176
    %2193 = vadd.xlane.f32.xlu0 %v2192
    %v2194 = vpop.xlane.xlu0 %2193
    %v2195 = vadd.f32 %v2177, %v2178
    %2196 = vadd.xlane.f32.xlu0 %v2195
    %v2197 = vpop.xlane.xlu0 %2196
    %v2198 = vadd.f32 %v2179, %v2180
    %2199 = vadd.xlane.f32.xlu0 %v2198
    %v2200 = vpop.xlane.xlu0 %2199
    %v2201 = vadd.f32 %v2181, %v2182
    %2202 = vadd.xlane.f32.xlu0 %v2201
    %v2203 = vpop.xlane.xlu0 %2202
    %v2204 = vadd.f32 %v2183, %v2184
    %2205 = vadd.xlane.f32.xlu0 %v2204
    %v2206 = vpop.xlane.xlu0 %2205
    %v2207 = vadd.f32 %v2185, %v2186
    %2208 = vadd.xlane.f32.xlu0 %v2207
    %v2209 = vpop.xlane.xlu0 %2208
    %v2210 = vadd.f32 %v2187, %v2188
    %2211 = vadd.xlane.f32.xlu0 %v2210
    %v2212 = vpop.xlane.xlu0 %2211
    %v2213 = vsub.f32 %v2117, %v2191
    %v2214 = vsub.f32 %v2118, %v2194
    %v2215 = vsub.f32 %v2119, %v2197
    %v2216 = vsub.f32 %v2120, %v2200
    %v2217 = vsub.f32 %v2121, %v2203
    %v2218 = vsub.f32 %v2122, %v2206
    %v2219 = vsub.f32 %v2123, %v2209
    %v2220 = vsub.f32 %v2124, %v2212
    %vm2221 = vcmask 7168
    %2222 = vst.msk [vmem:[%s12] sm:$0xff] %vm2221, %v2213
    %2223 = vst.msk [vmem:[%s12 + $0x8] sm:$0xff] %vm2221, %v2214
    %2224 = vst.msk [vmem:[%s12 + $0x10] sm:$0xff] %vm2221, %v2215
    %2225 = vst.msk [vmem:[%s12 + $0x18] sm:$0xff] %vm2221, %v2216
    %2226 = vst.msk [vmem:[%s12 + $0x20] sm:$0xff] %vm2221, %v2217
    %2227 = vst.msk [vmem:[%s12 + $0x28] sm:$0xff] %vm2221, %v2218
    %2228 = vst.msk [vmem:[%s12 + $0x30] sm:$0xff] %vm2221, %v2219
    %2229 = vst.msk [vmem:[%s12 + $0x38] sm:$0xff] %vm2221, %v2220
    // Predicated region
    $region54: #{classifier_forward.1} parent=1 // pred_check
      _
    $region55: #{classifier_forward.1} parent=1 // pred_check_branch
      %2231 = sbr.rel (0) target = $region57
    $region56: #{classifier_forward.1} parent=1 // pred_region
      %s2233 = ssub.s32 128, 128
      %2234 = vsyncadd [#allocation4], %s2233
      %s2236 = sshll.u32 [#allocation8], 4
      %s2237 = int_to_ptr.vmem [resolvable:$true] %s2236
      %2239 = dma.vmem_to_hbm [thread:$0]  %s2237, 128, %s10, [#allocation4]
    $region57: #{classifier_forward.1} parent=1 // pred_fallthru
      _
    // Predicated region
    $region58: #{classifier_forward.1} parent=1 // pred_check
      _
    $region59: #{classifier_forward.1} parent=1 // pred_check_branch
      %2241 = sbr.rel (0) target = $region61
    $region60: #{classifier_forward.1} parent=1 // pred_region
      %s2243 = ssub.s32 128, 128
      %2244 = vsyncadd [#allocation10], %s2243
      %s2246 = sshll.u32 [#allocation9], 4
      %s2247 = int_to_ptr.vmem [resolvable:$true] %s2246
      %2249 = dma.vmem_to_hbm [thread:$0]  %s2247, 128, %s11, [#allocation10]
    $region61: #{classifier_forward.1} parent=1 // pred_fallthru
      _
    // Predicated region
    $region62: #{classifier_forward.1} parent=1 // pred_check
      _
    $region63: #{classifier_forward.1} parent=1 // pred_check_branch
      %2251 = sbr.rel (0) target = $region65
    $region64: #{classifier_forward.1} parent=1 // pred_region
      _
    $region65: #{classifier_forward.1} parent=1 // pred_fallthru
      _
    // Predicated region
    $region66: #{classifier_forward.1} parent=1 // pred_check
      _
    $region67: #{classifier_forward.1} parent=1 // pred_check_branch
      %2253 = sbr.rel (0) target = $region69
    $region68: #{classifier_forward.1} parent=1 // pred_region
      %2254 = dma.done [#allocation4], 128
    $region69: #{classifier_forward.1} parent=1 // pred_fallthru
      _
    // Predicated region
    $region70: #{classifier_forward.1} parent=1 // pred_check
      _
    $region71: #{classifier_forward.1} parent=1 // pred_check_branch
      %2256 = sbr.rel (0) target = $region73
    $region72: #{classifier_forward.1} parent=1 // pred_region
      %2257 = dma.done [#allocation10], 128
    $region73: #{classifier_forward.1} parent=1 // pred_fallthru
      _
    // Predicated region
    $region74: #{classifier_forward.1} parent=1 // pred_check
      _
    $region75: #{classifier_forward.1} parent=1 // pred_check_branch
      %2259 = sbr.rel (0) target = $region77
    $region76: #{classifier_forward.1} parent=1 // pred_region
      _
    $region77: #{classifier_forward.1} parent=1 // pred_fallthru
      _
    %2260 = vsyncpa [#allocation3], 1
    %2261 = vsyncpa [#allocation6], 1
    %2262 = vsyncpa [#allocation4], 1
    %2263 = vsyncpa [#allocation10], 1

</llo_original>
